<compile_context>
chip_gen: v6e
topology: v6e:2x2x1
jax: 0.10.0
libtpu: 0.0.40
codegen_flags: <defaults>
</compile_context>

<pallas_src>
import jax
import jax.numpy as jnp
from jax.experimental import pallas as pl
from jax.experimental.pallas import tpu as pltpu

_LANE = 128
_SUBLANE = 8


def _round_up(x, m):
    return ((x + m - 1) // m) * m


def _tensorcores_per_chip():
    """Best-effort TensorCore count per chip (v7x / v5p / v4 -> 2, else 1)."""
    try:
        kind = jax.devices()[0].device_kind.lower()
    except Exception:
        return 1
    return 2 if any(tag in kind for tag in ("v7", "7x", "v5p", "v4")) else 1


def mlp_kernel(x_ref, w1_ref, b1_ref, w2_ref, b2_ref, w3_ref, b3_ref, o_ref):
    # Cast x to the weight compute dtype in-kernel (no padded HBM copy of x).
    x = x_ref[...].astype(w1_ref.dtype)
    # fc1 + ReLU  (compute-dtype operands, f32 accumulation, f32 bias add)
    h = jnp.dot(x, w1_ref[...], preferred_element_type=jnp.float32)
    h = jnp.maximum(h + b1_ref[...], 0.0).astype(w2_ref.dtype)
    # fc2 + ReLU
    h = jnp.dot(h, w2_ref[...], preferred_element_type=jnp.float32)
    h = jnp.maximum(h + b2_ref[...], 0.0).astype(w3_ref.dtype)
    # fc3 (logits, no activation)
    out = jnp.dot(h, w3_ref[...], preferred_element_type=jnp.float32) + b3_ref[...]
    o_ref[...] = out.astype(o_ref.dtype)


def prepare_params(w1, b1, w2, b2, w3, b3, *, compute_dtype=jnp.bfloat16):
    """Pad hidden/output feature dims to the 128-lane width and cast ONCE
    (outside the per-forward path).  fc1's input dim stays unpadded because x
    is passed to the kernel with its true feature width.
    Weights: [in, out] in `compute_dtype`; biases: [1, out] in float32.
    Returns (padded_params, num_classes)."""
    in_dim, hid = w1.shape
    out_dim = w3.shape[1]
    hid_p = _round_up(hid, _LANE)
    out_p = _round_up(out_dim, _LANE)

    def pad2(a, rows, cols, dtype):
        return jnp.pad(
            a, ((0, rows - a.shape[0]), (0, cols - a.shape[1]))
        ).astype(dtype)

    w1_p = pad2(w1, in_dim, hid_p, compute_dtype)
    w2_p = pad2(w2, hid_p, hid_p, compute_dtype)
    w3_p = pad2(w3, hid_p, out_p, compute_dtype)
    b1_p = pad2(b1, 1, hid_p, jnp.float32)
    b2_p = pad2(b2, 1, hid_p, jnp.float32)
    b3_p = pad2(b3, 1, out_p, jnp.float32)
    return (w1_p, b1_p, w2_p, b2_p, w3_p, b3_p), out_dim


def mlp_forward(x, padded_params, num_classes, *, batch_tile=None,
                max_batch_tile=512, trim_output=True):
    """Forward pass.  `padded_params` must come from `prepare_params`."""
    w1_p, b1_p, w2_p, b2_p, w3_p, b3_p = padded_params
    B, in_dim = x.shape
    assert w1_p.shape[0] == in_dim, "x feature dim must match fc1 input dim"
    hid_p = w1_p.shape[1]
    out_p = w3_p.shape[1]

    # Generation-aware batch tile: one grid step per TensorCore for small B
    # (grid=(1,) on single-TC v5e/v6e, grid=(2,) on 2-TC v7x), capped so a
    # tile's activations stay comfortably in VMEM.
    if batch_tile is None:
        batch_tile = pl.cdiv(B, _tensorcores_per_chip())
    bt = _round_up(min(max(batch_tile, _SUBLANE), max_batch_tile), _SUBLANE)
    B_p = _round_up(B, bt)

    # Row-pad x only when the batch is ragged; no feature padding and no
    # compute-dtype copy of x in HBM.
    x_in = x if B_p == B else jnp.pad(x, ((0, B_p - B), (0, 0)))

    grid = (B_p // bt,)
    itemsize_w = jnp.dtype(w1_p.dtype).itemsize

    # VMEM guard for the resident-weight strategy (v7x: 64 MiB VMEM per TC).
    resident_weight_bytes = (
        (in_dim * hid_p + hid_p * hid_p + hid_p * out_p) * itemsize_w
        + (2 * hid_p + out_p) * 4
    )
    if resident_weight_bytes > 40 * 1024 * 1024:
        # TODO(synk): add a K-tiled contraction grid axis ("arbitrary") with an
        # f32 accumulator scratch instead of keeping all weights VMEM-resident.
        raise NotImplementedError(
            "hidden size too large for the resident-weight kernel; needs K-tiling"
        )

    # Cost estimate reflecting real HBM traffic: f32 x read, weights/biases
    # read once, f32 output write.
    flops = 2 * B_p * (in_dim * hid_p + hid_p * hid_p + hid_p * out_p)
    bytes_accessed = int(
        B_p * in_dim * jnp.dtype(x.dtype).itemsize
        + resident_weight_bytes
        + B_p * out_p * 4
    )
    cost = pl.CostEstimate(flops=flops, transcendentals=0,
                           bytes_accessed=bytes_accessed)

    out_spec = pl.BlockSpec((bt, out_p), lambda i: (i, 0))   # lane-dense store
    compiler_params = pltpu.CompilerParams(dimension_semantics=("parallel",))

    def weight_spec(shape, single_buffer):
        # Constant index_map -> block never changes across grid steps; with
        # single buffering Pallas does not allocate a useless second buffer.
        if single_buffer:
            return pl.BlockSpec(shape, lambda i: (0, 0),
                                pipeline_mode=pl.Buffered(1))
        return pl.BlockSpec(shape, lambda i: (0, 0))

    def build(single_buffer):
        in_specs = [
            pl.BlockSpec((bt, in_dim), lambda i: (i, 0)),        # x tile (unpadded K)
            weight_spec((in_dim, hid_p), single_buffer),         # w1
            weight_spec((1, hid_p), single_buffer),              # b1
            weight_spec((hid_p, hid_p), single_buffer),          # w2
            weight_spec((1, hid_p), single_buffer),              # b2
            weight_spec((hid_p, out_p), single_buffer),          # w3
            weight_spec((1, out_p), single_buffer),              # b3
        ]
        return pl.pallas_call(
            mlp_kernel,
            out_shape=jax.ShapeDtypeStruct((B_p, out_p), jnp.float32),
            grid_spec=pl.GridSpec(grid=grid, in_specs=in_specs,
                                  out_specs=out_spec),
            compiler_params=compiler_params,
            cost_estimate=cost,
        )

    args = (x_in, w1_p, b1_p, w2_p, b2_p, w3_p, b3_p)
    try:
        out_padded = build(single_buffer=True)(*args)
    except Exception:
        # Fallback if this Pallas version rejects single-buffered blocks.
        out_padded = build(single_buffer=False)(*args)

    if not trim_output:
        return out_padded  # (B_p, out_p) padded; cheaper if the consumer tolerates it
    return out_padded[:B, :num_classes]


def init_params(key, input_size, hidden_size, num_classes):
    """Deterministic synthetic parameters (PyTorch-like uniform fan-in init)."""
    ks = jax.random.split(key, 6)

    def lin(kw, kb, fan_in, fan_out):
        bound = 1.0 / jnp.sqrt(fan_in)
        w = jax.random.uniform(kw, (fan_in, fan_out), jnp.float32, -bound, bound)
        b = jax.random.uniform(kb, (1, fan_out), jnp.float32, -bound, bound)
        return w, b

    w1, b1 = lin(ks[0], ks[1], input_size, hidden_size)
    w2, b2 = lin(ks[2], ks[3], hidden_size, hidden_size)
    w3, b3 = lin(ks[4], ks[5], hidden_size, num_classes)
    return w1, b1, w2, b2, w3, b3


if __name__ == "__main__":
    input_size, hidden_size, num_classes = 32, 32, 16
    batch = 256

    key = jax.random.PRNGKey(0)
    kx, kp = jax.random.split(key)

    x = jax.random.normal(kx, (batch, input_size), jnp.float32)
    w1, b1, w2, b2, w3, b3 = init_params(kp, input_size, hidden_size, num_classes)

    # Pure-f32 reference matching PyTorch nn.Linear semantics.
    hp = jax.lax.Precision.HIGHEST
    ref = jnp.maximum(jnp.dot(x, w1, precision=hp) + b1, 0.0)
    ref = jnp.maximum(jnp.dot(ref, w2, precision=hp) + b2, 0.0)
    ref = jnp.dot(ref, w3, precision=hp) + b3

    # 1) f32-operand path: faithful to the PyTorch module's float32 math.
    params_f32, out_dim = prepare_params(w1, b1, w2, b2, w3, b3,
                                         compute_dtype=jnp.float32)
    out_f32 = jax.block_until_ready(mlp_forward(x, params_f32, out_dim))
    assert out_f32.shape == (batch, num_classes)
    assert jnp.allclose(out_f32, ref, atol=1e-4, rtol=1e-4), (
        float(jnp.max(jnp.abs(out_f32 - ref)))
    )

    # 2) bf16-operand fast path (f32 accumulation): looser tolerance.
    params_bf16, _ = prepare_params(w1, b1, w2, b2, w3, b3,
                                    compute_dtype=jnp.bfloat16)
    out_bf16 = jax.block_until_ready(mlp_forward(x, params_bf16, out_dim))
    assert out_bf16.shape == (batch, num_classes)
    assert jnp.allclose(out_bf16, ref, atol=5e-2, rtol=5e-2), (
        float(jnp.max(jnp.abs(out_bf16 - ref)))
    )

    print("KERNEL_OK")
</pallas_src>

<mosaic_0001>
module attributes {stable_mosaic.version = 11 : i64} {
  func.func @mlp_kernel(%arg0: i32, %arg1: memref<256x32xf32, #tpu.memory_space<vmem>>, %arg2: memref<32x128xf32, #tpu.memory_space<vmem>>, %arg3: memref<1x128xf32, #tpu.memory_space<vmem>>, %arg4: memref<128x128xf32, #tpu.memory_space<vmem>>, %arg5: memref<1x128xf32, #tpu.memory_space<vmem>>, %arg6: memref<128x128xf32, #tpu.memory_space<vmem>>, %arg7: memref<1x128xf32, #tpu.memory_space<vmem>>, %arg8: memref<256x128xf32, #tpu.memory_space<vmem>>) attributes {dimension_semantics = [#tpu.dimension_semantics<parallel>], iteration_bounds = array<i64: 1>, scalar_prefetch = 0 : i64, scratch_operands = 0 : i64, tpu.core_type = #tpu.core_type<tc>, window_params = [{transform_indices = @transform_0, window_bounds = array<i64: 256, 32>}, {pipeline_mode = #tpu.pipeline_mode<synchronous>, transform_indices = @transform_1, window_bounds = array<i64: 32, 128>}, {pipeline_mode = #tpu.pipeline_mode<synchronous>, transform_indices = @transform_2, window_bounds = array<i64: 1, 128>}, {pipeline_mode = #tpu.pipeline_mode<synchronous>, transform_indices = @transform_3, window_bounds = array<i64: 128, 128>}, {pipeline_mode = #tpu.pipeline_mode<synchronous>, transform_indices = @transform_4, window_bounds = array<i64: 1, 128>}, {pipeline_mode = #tpu.pipeline_mode<synchronous>, transform_indices = @transform_5, window_bounds = array<i64: 128, 128>}, {pipeline_mode = #tpu.pipeline_mode<synchronous>, transform_indices = @transform_6, window_bounds = array<i64: 1, 128>}, {transform_indices = @transform_7, window_bounds = array<i64: 256, 128>}]} {
    %c0 = arith.constant 0 : index
    %c0_0 = arith.constant 0 : index
    %0 = vector.load %arg1[%c0, %c0_0] : memref<256x32xf32, #tpu.memory_space<vmem>>, vector<256x32xf32>
    %c0_1 = arith.constant 0 : index
    %c0_2 = arith.constant 0 : index
    %1 = vector.load %arg2[%c0_1, %c0_2] : memref<32x128xf32, #tpu.memory_space<vmem>>, vector<32x128xf32>
    %cst = arith.constant dense<0.000000e+00> : vector<256x128xf32>
    %2 = tpu.matmul %0, %1, %cst {dimension_numbers = #tpu.dot_dimension_numbers<[1], [0], [0], [1], [0, 0, 1, 1], [], []>} : vector<256x32xf32>, vector<32x128xf32>, vector<256x128xf32> -> vector<256x128xf32>
    %c0_3 = arith.constant 0 : index
    %c0_4 = arith.constant 0 : index
    %3 = vector.load %arg3[%c0_3, %c0_4] : memref<1x128xf32, #tpu.memory_space<vmem>>, vector<1x128xf32>
    %4 = vector.broadcast %3 : vector<1x128xf32> to vector<256x128xf32>
    %5 = arith.addf %2, %4 : vector<256x128xf32>
    %cst_5 = arith.constant 0.000000e+00 : f32
    %6 = vector.broadcast %cst_5 : f32 to vector<256x128xf32>
    %7 = arith.maximumf %5, %6 : vector<256x128xf32>
    %c0_6 = arith.constant 0 : index
    %c0_7 = arith.constant 0 : index
    %8 = vector.load %arg4[%c0_6, %c0_7] : memref<128x128xf32, #tpu.memory_space<vmem>>, vector<128x128xf32>
    %cst_8 = arith.constant dense<0.000000e+00> : vector<256x128xf32>
    %9 = tpu.matmul %7, %8, %cst_8 {dimension_numbers = #tpu.dot_dimension_numbers<[1], [0], [0], [1], [0, 0, 1, 1], [], []>} : vector<256x128xf32>, vector<128x128xf32>, vector<256x128xf32> -> vector<256x128xf32>
    %c0_9 = arith.constant 0 : index
    %c0_10 = arith.constant 0 : index
    %10 = vector.load %arg5[%c0_9, %c0_10] : memref<1x128xf32, #tpu.memory_space<vmem>>, vector<1x128xf32>
    %11 = vector.broadcast %10 : vector<1x128xf32> to vector<256x128xf32>
    %12 = arith.addf %9, %11 : vector<256x128xf32>
    %cst_11 = arith.constant 0.000000e+00 : f32
    %13 = vector.broadcast %cst_11 : f32 to vector<256x128xf32>
    %14 = arith.maximumf %12, %13 : vector<256x128xf32>
    %c0_12 = arith.constant 0 : index
    %c0_13 = arith.constant 0 : index
    %15 = vector.load %arg6[%c0_12, %c0_13] : memref<128x128xf32, #tpu.memory_space<vmem>>, vector<128x128xf32>
    %cst_14 = arith.constant dense<0.000000e+00> : vector<256x128xf32>
    %16 = tpu.matmul %14, %15, %cst_14 {dimension_numbers = #tpu.dot_dimension_numbers<[1], [0], [0], [1], [0, 0, 1, 1], [], []>} : vector<256x128xf32>, vector<128x128xf32>, vector<256x128xf32> -> vector<256x128xf32>
    %c0_15 = arith.constant 0 : index
    %c0_16 = arith.constant 0 : index
    %17 = vector.load %arg7[%c0_15, %c0_16] : memref<1x128xf32, #tpu.memory_space<vmem>>, vector<1x128xf32>
    %18 = vector.broadcast %17 : vector<1x128xf32> to vector<256x128xf32>
    %19 = arith.addf %16, %18 : vector<256x128xf32>
    %c0_17 = arith.constant 0 : index
    %c0_18 = arith.constant 0 : index
    %20 = vector.load %arg8[%c0_17, %c0_18] : memref<256x128xf32, #tpu.memory_space<vmem>>, vector<256x128xf32>
    tpu.vector_store %arg8[%c0_17, %c0_18], %19 {strides = array<i32>} : memref<256x128xf32, #tpu.memory_space<vmem>>, vector<256x128xf32>,
    return
  }
  func.func @transform_0(%arg0: i32) -> (i32, i32) {
    %c0_i32 = arith.constant 0 : i32
    %c0_i32_0 = arith.constant 0 : i32
    return %arg0, %c0_i32 : i32, i32
  }
  func.func @transform_1(%arg0: i32) -> (i32, i32) {
    %c0_i32 = arith.constant 0 : i32
    %c0_i32_0 = arith.constant 0 : i32
    %c0_i32_1 = arith.constant 0 : i32
    return %c0_i32, %c0_i32_0 : i32, i32
  }
  func.func @transform_2(%arg0: i32) -> (i32, i32) {
    %c0_i32 = arith.constant 0 : i32
    %c0_i32_0 = arith.constant 0 : i32
    %c0_i32_1 = arith.constant 0 : i32
    return %c0_i32, %c0_i32_0 : i32, i32
  }
  func.func @transform_3(%arg0: i32) -> (i32, i32) {
    %c0_i32 = arith.constant 0 : i32
    %c0_i32_0 = arith.constant 0 : i32
    %c0_i32_1 = arith.constant 0 : i32
    return %c0_i32, %c0_i32_0 : i32, i32
  }
  func.func @transform_4(%arg0: i32) -> (i32, i32) {
    %c0_i32 = arith.constant 0 : i32
    %c0_i32_0 = arith.constant 0 : i32
    %c0_i32_1 = arith.constant 0 : i32
    return %c0_i32, %c0_i32_0 : i32, i32
  }
  func.func @transform_5(%arg0: i32) -> (i32, i32) {
    %c0_i32 = arith.constant 0 : i32
    %c0_i32_0 = arith.constant 0 : i32
    %c0_i32_1 = arith.constant 0 : i32
    return %c0_i32, %c0_i32_0 : i32, i32
  }
  func.func @transform_6(%arg0: i32) -> (i32, i32) {
    %c0_i32 = arith.constant 0 : i32
    %c0_i32_0 = arith.constant 0 : i32
    %c0_i32_1 = arith.constant 0 : i32
    return %c0_i32, %c0_i32_0 : i32, i32
  }
  func.func @transform_7(%arg0: i32) -> (i32, i32) {
    %c0_i32 = arith.constant 0 : i32
    %c0_i32_0 = arith.constant 0 : i32
    return %arg0, %c0_i32 : i32, i32
  }
}

module attributes {stable_mosaic.version = 11 : i64} {
  func.func @mlp_kernel(%arg0: i32, %arg1: memref<256x32xf32, #tpu.memory_space<vmem>>, %arg2: memref<32x128xf32, #tpu.memory_space<vmem>>, %arg3: memref<1x128xf32, #tpu.memory_space<vmem>>, %arg4: memref<128x128xf32, #tpu.memory_space<vmem>>, %arg5: memref<1x128xf32, #tpu.memory_space<vmem>>, %arg6: memref<128x128xf32, #tpu.memory_space<vmem>>, %arg7: memref<1x128xf32, #tpu.memory_space<vmem>>, %arg8: memref<256x128xf32, #tpu.memory_space<vmem>>) attributes {dimension_semantics = [#tpu.dimension_semantics<parallel>], iteration_bounds = array<i64: 1>, scalar_prefetch = 0 : i64, scratch_operands = 0 : i64, tpu.core_type = #tpu.core_type<tc>, window_params = [{transform_indices = @transform_0, window_bounds = array<i64: 256, 32>}, {pipeline_mode = #tpu.pipeline_mode<synchronous>, transform_indices = @transform_1, window_bounds = array<i64: 32, 128>}, {pipeline_mode = #tpu.pipeline_mode<synchronous>, transform_indices = @transform_2, window_bounds = array<i64: 1, 128>}, {pipeline_mode = #tpu.pipeline_mode<synchronous>, transform_indices = @transform_3, window_bounds = array<i64: 128, 128>}, {pipeline_mode = #tpu.pipeline_mode<synchronous>, transform_indices = @transform_4, window_bounds = array<i64: 1, 128>}, {pipeline_mode = #tpu.pipeline_mode<synchronous>, transform_indices = @transform_5, window_bounds = array<i64: 128, 128>}, {pipeline_mode = #tpu.pipeline_mode<synchronous>, transform_indices = @transform_6, window_bounds = array<i64: 1, 128>}, {transform_indices = @transform_7, window_bounds = array<i64: 256, 128>}]} {
    %c0 = arith.constant 0 : index
    %c0_0 = arith.constant 0 : index
    %0 = vector.load %arg1[%c0, %c0_0] : memref<256x32xf32, #tpu.memory_space<vmem>>, vector<256x32xf32>
    %c0_1 = arith.constant 0 : index
    %c0_2 = arith.constant 0 : index
    %1 = vector.load %arg2[%c0_1, %c0_2] : memref<32x128xf32, #tpu.memory_space<vmem>>, vector<32x128xf32>
    %cst = arith.constant dense<0.000000e+00> : vector<256x128xf32>
    %2 = tpu.matmul %0, %1, %cst {dimension_numbers = #tpu.dot_dimension_numbers<[1], [0], [0], [1], [0, 0, 1, 1], [], []>} : vector<256x32xf32>, vector<32x128xf32>, vector<256x128xf32> -> vector<256x128xf32>
    %c0_3 = arith.constant 0 : index
    %c0_4 = arith.constant 0 : index
    %3 = vector.load %arg3[%c0_3, %c0_4] : memref<1x128xf32, #tpu.memory_space<vmem>>, vector<1x128xf32>
    %4 = vector.broadcast %3 : vector<1x128xf32> to vector<256x128xf32>
    %5 = arith.addf %2, %4 : vector<256x128xf32>
    %cst_5 = arith.constant 0.000000e+00 : f32
    %6 = vector.broadcast %cst_5 : f32 to vector<256x128xf32>
    %7 = arith.maximumf %5, %6 : vector<256x128xf32>
    %c0_6 = arith.constant 0 : index
    %c0_7 = arith.constant 0 : index
    %8 = vector.load %arg4[%c0_6, %c0_7] : memref<128x128xf32, #tpu.memory_space<vmem>>, vector<128x128xf32>
    %cst_8 = arith.constant dense<0.000000e+00> : vector<256x128xf32>
    %9 = tpu.matmul %7, %8, %cst_8 {dimension_numbers = #tpu.dot_dimension_numbers<[1], [0], [0], [1], [0, 0, 1, 1], [], []>} : vector<256x128xf32>, vector<128x128xf32>, vector<256x128xf32> -> vector<256x128xf32>
    %c0_9 = arith.constant 0 : index
    %c0_10 = arith.constant 0 : index
    %10 = vector.load %arg5[%c0_9, %c0_10] : memref<1x128xf32, #tpu.memory_space<vmem>>, vector<1x128xf32>
    %11 = vector.broadcast %10 : vector<1x128xf32> to vector<256x128xf32>
    %12 = arith.addf %9, %11 : vector<256x128xf32>
    %cst_11 = arith.constant 0.000000e+00 : f32
    %13 = vector.broadcast %cst_11 : f32 to vector<256x128xf32>
    %14 = arith.maximumf %12, %13 : vector<256x128xf32>
    %c0_12 = arith.constant 0 : index
    %c0_13 = arith.constant 0 : index
    %15 = vector.load %arg6[%c0_12, %c0_13] : memref<128x128xf32, #tpu.memory_space<vmem>>, vector<128x128xf32>
    %cst_14 = arith.constant dense<0.000000e+00> : vector<256x128xf32>
    %16 = tpu.matmul %14, %15, %cst_14 {dimension_numbers = #tpu.dot_dimension_numbers<[1], [0], [0], [1], [0, 0, 1, 1], [], []>} : vector<256x128xf32>, vector<128x128xf32>, vector<256x128xf32> -> vector<256x128xf32>
    %c0_15 = arith.constant 0 : index
    %c0_16 = arith.constant 0 : index
    %17 = vector.load %arg7[%c0_15, %c0_16] : memref<1x128xf32, #tpu.memory_space<vmem>>, vector<1x128xf32>
    %18 = vector.broadcast %17 : vector<1x128xf32> to vector<256x128xf32>
    %19 = arith.addf %16, %18 : vector<256x128xf32>
    %c0_17 = arith.constant 0 : index
    %c0_18 = arith.constant 0 : index
    %20 = vector.load %arg8[%c0_17, %c0_18] : memref<256x128xf32, #tpu.memory_space<vmem>>, vector<256x128xf32>
    tpu.vector_store %arg8[%c0_17, %c0_18], %19 {strides = array<i32>} : memref<256x128xf32, #tpu.memory_space<vmem>>, vector<256x128xf32>,
    return
  }
  func.func @transform_0(%arg0: i32) -> (i32, i32) {
    %c0_i32 = arith.constant 0 : i32
    %c0_i32_0 = arith.constant 0 : i32
    return %arg0, %c0_i32 : i32, i32
  }
  func.func @transform_1(%arg0: i32) -> (i32, i32) {
    %c0_i32 = arith.constant 0 : i32
    %c0_i32_0 = arith.constant 0 : i32
    %c0_i32_1 = arith.constant 0 : i32
    return %c0_i32, %c0_i32_0 : i32, i32
  }
  func.func @transform_2(%arg0: i32) -> (i32, i32) {
    %c0_i32 = arith.constant 0 : i32
    %c0_i32_0 = arith.constant 0 : i32
    %c0_i32_1 = arith.constant 0 : i32
    return %c0_i32, %c0_i32_0 : i32, i32
  }
  func.func @transform_3(%arg0: i32) -> (i32, i32) {
    %c0_i32 = arith.constant 0 : i32
    %c0_i32_0 = arith.constant 0 : i32
    %c0_i32_1 = arith.constant 0 : i32
    return %c0_i32, %c0_i32_0 : i32, i32
  }
  func.func @transform_4(%arg0: i32) -> (i32, i32) {
    %c0_i32 = arith.constant 0 : i32
    %c0_i32_0 = arith.constant 0 : i32
    %c0_i32_1 = arith.constant 0 : i32
    return %c0_i32, %c0_i32_0 : i32, i32
  }
  func.func @transform_5(%arg0: i32) -> (i32, i32) {
    %c0_i32 = arith.constant 0 : i32
    %c0_i32_0 = arith.constant 0 : i32
    %c0_i32_1 = arith.constant 0 : i32
    return %c0_i32, %c0_i32_0 : i32, i32
  }
  func.func @transform_6(%arg0: i32) -> (i32, i32) {
    %c0_i32 = arith.constant 0 : i32
    %c0_i32_0 = arith.constant 0 : i32
    %c0_i32_1 = arith.constant 0 : i32
    return %c0_i32, %c0_i32_0 : i32, i32
  }
  func.func @transform_7(%arg0: i32) -> (i32, i32) {
    %c0_i32 = arith.constant 0 : i32
    %c0_i32_0 = arith.constant 0 : i32
    return %arg0, %c0_i32 : i32, i32
  }
}

</mosaic_0001>

<llo_original>
// kernel: tpu_custom_call.1
$region0: #{tpu_custom_call.1}
  #allocation0 [shape = 'u32[]', space=smem, size = 0x4, offset = 0x4, fixed_abs, tag = 'smem constant byte address 0x4 - core index']
  #allocation1 [shape = 'u32[144,128]{1,0:T(1,128)}', space=vmem, size = 0x12000, scoped, tag = 'internal scratch']
  %s0 = inlined_call_operand.vmem [shape: f32[256,32], index: 0, kind: input, shape index: {}]
  %s1 = inlined_call_operand.vmem [shape: f32[32,128], index: 1, kind: input, shape index: {}]
  %s2 = inlined_call_operand.vmem [shape: f32[1,128], index: 2, kind: input, shape index: {}]
  %s3 = inlined_call_operand.vmem [shape: f32[128,128], index: 3, kind: input, shape index: {}]
  %s4 = inlined_call_operand.vmem [shape: f32[1,128], index: 4, kind: input, shape index: {}]
  %s5 = inlined_call_operand.vmem [shape: f32[128,128], index: 5, kind: input, shape index: {}]
  %s6 = inlined_call_operand.vmem [shape: f32[1,128], index: 6, kind: input, shape index: {}]
  %s7 = inlined_call_operand.hbm [shape: f32[256,128], index: 7, kind: output, shape index: {}]
  %s8 = sld [smem:[#allocation0]]
  $region38: #{tpu_custom_call.1} parent=0
    _
  %s10 = ssub.s32 1, %s8
  %s11 = scalar_select 0, %s10, %s8
  $region1: #{tpu_custom_call.1} parent=0
    #allocation2 [shape = 'u8[131072]{0}', space=vmem, size = 0x20000, scoped, tag = 'output window, operand 0, single buffered']
    #allocation3 [shape = 's32[1]{0}', space=sflag, size = 0x4, scoped, tag = 'scoped memory for tpu_custom_call.1']
    %12 = vsyncpa [#allocation3], 0
    // Predicated region
    $region2: #{tpu_custom_call.1} parent=1 // pred_check
      _
    $region3: #{tpu_custom_call.1} parent=1 // pred_check_branch
      %14 = sbr.rel (0) target = $region5
    $region4: #{tpu_custom_call.1} parent=1 // pred_region
      _
    $region5: #{tpu_custom_call.1} parent=1 // pred_fallthru
      _
    // Predicated region
    $region6: #{tpu_custom_call.1} parent=1 // pred_check
      _
    $region7: #{tpu_custom_call.1} parent=1 // pred_check_branch
      %16 = sbr.rel (0) target = $region9
    $region8: #{tpu_custom_call.1} parent=1 // pred_region
      _
    $region9: #{tpu_custom_call.1} parent=1 // pred_fallthru
      _
    // Predicated region
    $region10: #{tpu_custom_call.1} parent=1 // pred_check
      _
    $region11: #{tpu_custom_call.1} parent=1 // pred_check_branch
      %18 = sbr.rel (0) target = $region13
    $region12: #{tpu_custom_call.1} parent=1 // pred_region
      _
    $region13: #{tpu_custom_call.1} parent=1 // pred_fallthru
      _
    // Predicated region
    $region14: #{tpu_custom_call.1} parent=1 // pred_check
      _
    $region15: #{tpu_custom_call.1} parent=1 // pred_check_branch
      %20 = sbr.rel (0) target = $region17
    $region16: #{tpu_custom_call.1} parent=1 // pred_region
      _
    $region17: #{tpu_custom_call.1} parent=1 // pred_fallthru
      _
    // Predicated region
    $region18: #{tpu_custom_call.1} parent=1 // pred_check
      _
    $region19: #{tpu_custom_call.1} parent=1 // pred_check_branch
      %22 = sbr.rel (0) target = $region21
    $region20: #{tpu_custom_call.1} parent=1 // pred_region
      _
    $region21: #{tpu_custom_call.1} parent=1 // pred_fallthru
      _
    // Predicated region
    $region22: #{tpu_custom_call.1} parent=1 // pred_check
      _
    $region23: #{tpu_custom_call.1} parent=1 // pred_check_branch
      %24 = sbr.rel (0) target = $region25
    $region24: #{tpu_custom_call.1} parent=1 // pred_region
      _
    $region25: #{tpu_custom_call.1} parent=1 // pred_fallthru
      _
    // Predicated region
    $region26: #{tpu_custom_call.1} parent=1 // pred_check
      _
    $region27: #{tpu_custom_call.1} parent=1 // pred_check_branch
      %26 = sbr.rel (0) target = $region29
    $region28: #{tpu_custom_call.1} parent=1 // pred_region
      _
    $region29: #{tpu_custom_call.1} parent=1 // pred_fallthru
      _
    %v27 = vld [vmem:[%s0] sm:$0xff]
    %v28 = vld [vmem:[%s0 + $0x8] sm:$0xff]
    %v29 = vld [vmem:[%s0 + $0x10] sm:$0xff]
    %v30 = vld [vmem:[%s0 + $0x18] sm:$0xff]
    %v31 = vld [vmem:[%s0 + $0x20] sm:$0xff]
    %v32 = vld [vmem:[%s0 + $0x28] sm:$0xff]
    %v33 = vld [vmem:[%s0 + $0x30] sm:$0xff]
    %v34 = vld [vmem:[%s0 + $0x38] sm:$0xff]
    %v35 = vld [vmem:[%s0 + $0x40] sm:$0xff]
    %v36 = vld [vmem:[%s0 + $0x48] sm:$0xff]
    %v37 = vld [vmem:[%s0 + $0x50] sm:$0xff]
    %v38 = vld [vmem:[%s0 + $0x58] sm:$0xff]
    %v39 = vld [vmem:[%s0 + $0x60] sm:$0xff]
    %v40 = vld [vmem:[%s0 + $0x68] sm:$0xff]
    %v41 = vld [vmem:[%s0 + $0x70] sm:$0xff]
    %v42 = vld [vmem:[%s0 + $0x78] sm:$0xff]
    %v43 = vld [vmem:[%s0 + $0x80] sm:$0xff]
    %v44 = vld [vmem:[%s0 + $0x88] sm:$0xff]
    %v45 = vld [vmem:[%s0 + $0x90] sm:$0xff]
    %v46 = vld [vmem:[%s0 + $0x98] sm:$0xff]
    %v47 = vld [vmem:[%s0 + $0xa0] sm:$0xff]
    %v48 = vld [vmem:[%s0 + $0xa8] sm:$0xff]
    %v49 = vld [vmem:[%s0 + $0xb0] sm:$0xff]
    %v50 = vld [vmem:[%s0 + $0xb8] sm:$0xff]
    %v51 = vld [vmem:[%s0 + $0xc0] sm:$0xff]
    %v52 = vld [vmem:[%s0 + $0xc8] sm:$0xff]
    %v53 = vld [vmem:[%s0 + $0xd0] sm:$0xff]
    %v54 = vld [vmem:[%s0 + $0xd8] sm:$0xff]
    %v55 = vld [vmem:[%s0 + $0xe0] sm:$0xff]
    %v56 = vld [vmem:[%s0 + $0xe8] sm:$0xff]
    %v57 = vld [vmem:[%s0 + $0xf0] sm:$0xff]
    %v58 = vld [vmem:[%s0 + $0xf8] sm:$0xff]
    %v59 = vld [vmem:[%s1] sm:$0xff]
    %v60 = vld [vmem:[%s1 + $0x8] sm:$0xff]
    %v61 = vld [vmem:[%s1 + $0x10] sm:$0xff]
    %v62 = vld [vmem:[%s1 + $0x18] sm:$0xff]
    %v63 = vld [vmem:[%s2] sm:$0x1]
    %v65 = vlaneseq
    %v66 = vshrl.u32 %v65, 7
    %v67 = vsub.s32 0, %v66
    %v68 = vrot.slane %v63, %v67
    %vm70 = vcmask 261120
    %v72 = vsel %vm70, %v27, 0
    %v75 = vsel %vm70, %v28, 0
    %v78 = vsel %vm70, %v29, 0
    %v81 = vsel %vm70, %v30, 0
    %v84 = vsel %vm70, %v31, 0
    %v87 = vsel %vm70, %v32, 0
    %v90 = vsel %vm70, %v33, 0
    %v93 = vsel %vm70, %v34, 0
    %v96 = vsel %vm70, %v35, 0
    %v99 = vsel %vm70, %v36, 0
    %v102 = vsel %vm70, %v37, 0
    %v105 = vsel %vm70, %v38, 0
    %v108 = vsel %vm70, %v39, 0
    %v111 = vsel %vm70, %v40, 0
    %v114 = vsel %vm70, %v41, 0
    %v117 = vsel %vm70, %v42, 0
    %v120 = vsel %vm70, %v43, 0
    %v123 = vsel %vm70, %v44, 0
    %v126 = vsel %vm70, %v45, 0
    %v129 = vsel %vm70, %v46, 0
    %v132 = vsel %vm70, %v47, 0
    %v135 = vsel %vm70, %v48, 0
    %v138 = vsel %vm70, %v49, 0
    %v141 = vsel %vm70, %v50, 0
    %v144 = vsel %vm70, %v51, 0
    %v147 = vsel %vm70, %v52, 0
    %v150 = vsel %vm70, %v53, 0
    %v153 = vsel %vm70, %v54, 0
    %v156 = vsel %vm70, %v55, 0
    %v159 = vsel %vm70, %v56, 0
    %v162 = vsel %vm70, %v57, 0
    %v165 = vsel %vm70, %v58, 0
    %167 = vmatprep.subr.mxu0 0.0
    %168 = vmatpush1.msra.mxu0 0.0
    %169 = vmatprep.subr.mxu0 0.0
    %170 = vmatpush1.msra.mxu0 0.0
    %171 = vmatprep.subr.mxu0 0.0
    %172 = vmatpush1.msra.mxu0 0.0
    %173 = vmatprep.subr.mxu0 0.0
    %174 = vmatpush1.msra.mxu0 0.0
    %175 = vmatprep.subr.mxu0 0.0
    %176 = vmatpush1.msra.mxu0 0.0
    %177 = vmatprep.subr.mxu0 0.0
    %178 = vmatpush1.msra.mxu0 0.0
    %179 = vmatprep.subr.mxu0 0.0
    %180 = vmatpush1.msra.mxu0 0.0
    %181 = vmatprep.subr.mxu0 0.0
    %182 = vmatpush1.msra.mxu0 0.0
    %183 = vmatprep.subr.mxu0 0.0
    %184 = vmatpush1.msra.mxu0 0.0
    %185 = vmatprep.subr.mxu0 0.0
    %186 = vmatpush1.msra.mxu0 0.0
    %187 = vmatprep.subr.mxu0 0.0
    %188 = vmatpush1.msra.mxu0 0.0
    %189 = vmatprep.subr.mxu0 0.0
    %190 = vmatpush1.msra.mxu0 0.0
    %191 = vmatprep.subr.mxu0 0.0
    %192 = vmatpush1.msra.mxu0 %v62
    %193 = vmatprep.subr.mxu0 0.0
    %194 = vmatpush1.msra.mxu0 %v61
    %195 = vmatprep.subr.mxu0 0.0
    %196 = vmatpush1.msra.mxu0 %v60
    %197 = vmatprep.subr.mxu0 0.0
    %198 = vmatpush1.msra.mxu0 %v59
    %199 = vmatprep.subr.mxu0 0.0
    %200 = vmatpush2.msra.mxu0 0.0
    %201 = vmatprep.subr.mxu0 0.0
    %202 = vmatpush2.msra.mxu0 0.0
    %203 = vmatprep.subr.mxu0 0.0
    %204 = vmatpush2.msra.mxu0 0.0
    %205 = vmatprep.subr.mxu0 0.0
    %206 = vmatpush2.msra.mxu0 0.0
    %207 = vmatprep.subr.mxu0 0.0
    %208 = vmatpush2.msra.mxu0 0.0
    %209 = vmatprep.subr.mxu0 0.0
    %210 = vmatpush2.msra.mxu0 0.0
    %211 = vmatprep.subr.mxu0 0.0
    %212 = vmatpush2.msra.mxu0 0.0
    %213 = vmatprep.subr.mxu0 0.0
    %214 = vmatpush2.msra.mxu0 0.0
    %215 = vmatprep.subr.mxu0 0.0
    %216 = vmatpush2.msra.mxu0 0.0
    %217 = vmatprep.subr.mxu0 0.0
    %218 = vmatpush2.msra.mxu0 0.0
    %219 = vmatprep.subr.mxu0 0.0
    %220 = vmatpush2.msra.mxu0 0.0
    %221 = vmatprep.subr.mxu0 0.0
    %222 = vmatpush2.msra.mxu0 0.0
    %223 = vmatprep.subr.mxu0 0.0
    %224 = vmatpush2.msra.mxu0 0.0
    %225 = vmatprep.subr.mxu0 0.0
    %226 = vmatpush2.msra.mxu0 0.0
    %227 = vmatprep.subr.mxu0 0.0
    %228 = vmatpush2.msra.mxu0 0.0
    %229 = vmatprep.subr.mxu0 0.0
    %230 = vmatpush2.msra.mxu0 0.0
    %231 = vmatprep.mubr.f32.mxu0 0.0
    %232 = vmatmul.mubr.f32.gmra.mxu0 %v72
    %v233 = vpop.f32.mrf.mxu0
    %v234 = vadd.f32 %v68, %v233
    %v235 = vpop.f32.mrf.mxu0
    %236 = vmatprep.mubr.f32.mxu0 0.0
    %237 = vmatmul.mubr.f32.gmra.mxu0 %v75
    %v238 = vpop.f32.mrf.mxu0
    %v239 = vadd.f32 %v68, %v238
    %v240 = vpop.f32.mrf.mxu0
    %241 = vmatprep.mubr.f32.mxu0 0.0
    %242 = vmatmul.mubr.f32.gmra.mxu0 %v78
    %v243 = vpop.f32.mrf.mxu0
    %v244 = vadd.f32 %v68, %v243
    %v245 = vpop.f32.mrf.mxu0
    %246 = vmatprep.mubr.f32.mxu0 0.0
    %247 = vmatmul.mubr.f32.gmra.mxu0 %v81
    %v248 = vpop.f32.mrf.mxu0
    %v249 = vadd.f32 %v68, %v248
    %v250 = vpop.f32.mrf.mxu0
    %251 = vmatprep.mubr.f32.mxu0 0.0
    %252 = vmatmul.mubr.f32.gmra.mxu0 %v84
    %v253 = vpop.f32.mrf.mxu0
    %v254 = vadd.f32 %v68, %v253
    %v255 = vpop.f32.mrf.mxu0
    %256 = vmatprep.mubr.f32.mxu0 0.0
    %257 = vmatmul.mubr.f32.gmra.mxu0 %v87
    %v258 = vpop.f32.mrf.mxu0
    %v259 = vadd.f32 %v68, %v258
    %v260 = vpop.f32.mrf.mxu0
    %261 = vmatprep.mubr.f32.mxu0 0.0
    %262 = vmatmul.mubr.f32.gmra.mxu0 %v90
    %v263 = vpop.f32.mrf.mxu0
    %v264 = vadd.f32 %v68, %v263
    %v265 = vpop.f32.mrf.mxu0
    %266 = vmatprep.mubr.f32.mxu0 0.0
    %267 = vmatmul.mubr.f32.gmra.mxu0 %v93
    %v268 = vpop.f32.mrf.mxu0
    %v269 = vadd.f32 %v68, %v268
    %v270 = vpop.f32.mrf.mxu0
    %271 = vmatprep.mubr.f32.mxu0 0.0
    %272 = vmatmul.mubr.f32.gmra.mxu0 %v96
    %v273 = vpop.f32.mrf.mxu0
    %v274 = vadd.f32 %v68, %v273
    %v275 = vpop.f32.mrf.mxu0
    %276 = vmatprep.mubr.f32.mxu0 0.0
    %277 = vmatmul.mubr.f32.gmra.mxu0 %v99
    %v278 = vpop.f32.mrf.mxu0
    %v279 = vadd.f32 %v68, %v278
    %v280 = vpop.f32.mrf.mxu0
    %281 = vmatprep.mubr.f32.mxu0 0.0
    %282 = vmatmul.mubr.f32.gmra.mxu0 %v102
    %v283 = vpop.f32.mrf.mxu0
    %v284 = vadd.f32 %v68, %v283
    %v285 = vpop.f32.mrf.mxu0
    %286 = vmatprep.mubr.f32.mxu0 0.0
    %287 = vmatmul.mubr.f32.gmra.mxu0 %v105
    %v288 = vpop.f32.mrf.mxu0
    %v289 = vadd.f32 %v68, %v288
    %v290 = vpop.f32.mrf.mxu0
    %291 = vmatprep.mubr.f32.mxu0 0.0
    %292 = vmatmul.mubr.f32.gmra.mxu0 %v108
    %v293 = vpop.f32.mrf.mxu0
    %v294 = vadd.f32 %v68, %v293
    %v295 = vpop.f32.mrf.mxu0
    %296 = vmatprep.mubr.f32.mxu0 0.0
    %297 = vmatmul.mubr.f32.gmra.mxu0 %v111
    %v298 = vpop.f32.mrf.mxu0
    %v299 = vadd.f32 %v68, %v298
    %v300 = vpop.f32.mrf.mxu0
    %301 = vmatprep.mubr.f32.mxu0 0.0
    %302 = vmatmul.mubr.f32.gmra.mxu0 %v114
    %v303 = vpop.f32.mrf.mxu0
    %v304 = vadd.f32 %v68, %v303
    %v305 = vpop.f32.mrf.mxu0
    %306 = vmatprep.mubr.f32.mxu0 0.0
    %307 = vmatmul.mubr.f32.gmra.mxu0 %v117
    %v308 = vpop.f32.mrf.mxu0
    %v309 = vadd.f32 %v68, %v308
    %v310 = vpop.f32.mrf.mxu0
    %311 = vmatprep.mubr.f32.mxu0 0.0
    %312 = vmatmul.mubr.f32.gmra.mxu0 %v120
    %v313 = vpop.f32.mrf.mxu0
    %v314 = vadd.f32 %v68, %v313
    %v315 = vpop.f32.mrf.mxu0
    %316 = vmatprep.mubr.f32.mxu0 0.0
    %317 = vmatmul.mubr.f32.gmra.mxu0 %v123
    %v318 = vpop.f32.mrf.mxu0
    %v319 = vadd.f32 %v68, %v318
    %v320 = vpop.f32.mrf.mxu0
    %321 = vmatprep.mubr.f32.mxu0 0.0
    %322 = vmatmul.mubr.f32.gmra.mxu0 %v126
    %v323 = vpop.f32.mrf.mxu0
    %v324 = vadd.f32 %v68, %v323
    %v325 = vpop.f32.mrf.mxu0
    %326 = vmatprep.mubr.f32.mxu0 0.0
    %327 = vmatmul.mubr.f32.gmra.mxu0 %v129
    %v328 = vpop.f32.mrf.mxu0
    %v329 = vadd.f32 %v68, %v328
    %v330 = vpop.f32.mrf.mxu0
    %331 = vmatprep.mubr.f32.mxu0 0.0
    %332 = vmatmul.mubr.f32.gmra.mxu0 %v132
    %v333 = vpop.f32.mrf.mxu0
    %v334 = vadd.f32 %v68, %v333
    %v335 = vpop.f32.mrf.mxu0
    %336 = vmatprep.mubr.f32.mxu0 0.0
    %337 = vmatmul.mubr.f32.gmra.mxu0 %v135
    %v338 = vpop.f32.mrf.mxu0
    %v339 = vadd.f32 %v68, %v338
    %v340 = vpop.f32.mrf.mxu0
    %341 = vmatprep.mubr.f32.mxu0 0.0
    %342 = vmatmul.mubr.f32.gmra.mxu0 %v138
    %v343 = vpop.f32.mrf.mxu0
    %v344 = vadd.f32 %v68, %v343
    %v345 = vpop.f32.mrf.mxu0
    %346 = vmatprep.mubr.f32.mxu0 0.0
    %347 = vmatmul.mubr.f32.gmra.mxu0 %v141
    %v348 = vpop.f32.mrf.mxu0
    %v349 = vadd.f32 %v68, %v348
    %v350 = vpop.f32.mrf.mxu0
    %351 = vmatprep.mubr.f32.mxu0 0.0
    %352 = vmatmul.mubr.f32.gmra.mxu0 %v144
    %v353 = vpop.f32.mrf.mxu0
    %v354 = vadd.f32 %v68, %v353
    %v355 = vpop.f32.mrf.mxu0
    %356 = vmatprep.mubr.f32.mxu0 0.0
    %357 = vmatmul.mubr.f32.gmra.mxu0 %v147
    %v358 = vpop.f32.mrf.mxu0
    %v359 = vadd.f32 %v68, %v358
    %v360 = vpop.f32.mrf.mxu0
    %361 = vmatprep.mubr.f32.mxu0 0.0
    %362 = vmatmul.mubr.f32.gmra.mxu0 %v150
    %v363 = vpop.f32.mrf.mxu0
    %v364 = vadd.f32 %v68, %v363
    %v365 = vpop.f32.mrf.mxu0
    %366 = vmatprep.mubr.f32.mxu0 0.0
    %367 = vmatmul.mubr.f32.gmra.mxu0 %v153
    %v368 = vpop.f32.mrf.mxu0
    %v369 = vadd.f32 %v68, %v368
    %v370 = vpop.f32.mrf.mxu0
    %371 = vmatprep.mubr.f32.mxu0 0.0
    %372 = vmatmul.mubr.f32.gmra.mxu0 %v156
    %v373 = vpop.f32.mrf.mxu0
    %v374 = vadd.f32 %v68, %v373
    %v375 = vpop.f32.mrf.mxu0
    %376 = vmatprep.mubr.f32.mxu0 0.0
    %377 = vmatmul.mubr.f32.gmra.mxu0 %v159
    %v378 = vpop.f32.mrf.mxu0
    %v379 = vadd.f32 %v68, %v378
    %v380 = vpop.f32.mrf.mxu0
    %381 = vmatprep.mubr.f32.mxu0 0.0
    %382 = vmatmul.mubr.f32.gmra.mxu0 %v162
    %v383 = vpop.f32.mrf.mxu0
    %v384 = vadd.f32 %v68, %v383
    %v385 = vpop.f32.mrf.mxu0
    %386 = vmatprep.mubr.f32.mxu0 0.0
    %387 = vmatmul.mubr.f32.gmra.mxu0 %v165
    %v388 = vpop.f32.mrf.mxu0
    %v389 = vadd.f32 %v68, %v388
    %v390 = vpop.f32.mrf.mxu0
    %391 = vdwg.mxu0
    %v392 = vmax.f32 %v234, 0.0
    %v393 = vmax.f32 %v239, 0.0
    %v394 = vmax.f32 %v244, 0.0
    %v395 = vmax.f32 %v249, 0.0
    %v396 = vmax.f32 %v254, 0.0
    %v397 = vmax.f32 %v259, 0.0
    %v398 = vmax.f32 %v264, 0.0
    %v399 = vmax.f32 %v269, 0.0
    %v400 = vmax.f32 %v274, 0.0
    %v401 = vmax.f32 %v279, 0.0
    %v402 = vmax.f32 %v284, 0.0
    %v403 = vmax.f32 %v289, 0.0
    %v404 = vmax.f32 %v294, 0.0
    %v405 = vmax.f32 %v299, 0.0
    %v406 = vmax.f32 %v304, 0.0
    %v407 = vmax.f32 %v309, 0.0
    %v408 = vmax.f32 %v314, 0.0
    %v409 = vmax.f32 %v319, 0.0
    %v410 = vmax.f32 %v324, 0.0
    %v411 = vmax.f32 %v329, 0.0
    %v412 = vmax.f32 %v334, 0.0
    %v413 = vmax.f32 %v339, 0.0
    %v414 = vmax.f32 %v344, 0.0
    %v415 = vmax.f32 %v349, 0.0
    %v416 = vmax.f32 %v354, 0.0
    %v417 = vmax.f32 %v359, 0.0
    %v418 = vmax.f32 %v364, 0.0
    %v419 = vmax.f32 %v369, 0.0
    %v420 = vmax.f32 %v374, 0.0
    %v421 = vmax.f32 %v379, 0.0
    %v422 = vmax.f32 %v384, 0.0
    %v423 = vmax.f32 %v389, 0.0
    %v424 = vld [vmem:[%s3] sm:$0xff]
    %v425 = vld [vmem:[%s3 + $0x8] sm:$0xff]
    %v426 = vld [vmem:[%s3 + $0x10] sm:$0xff]
    %v427 = vld [vmem:[%s3 + $0x18] sm:$0xff]
    %v428 = vld [vmem:[%s3 + $0x20] sm:$0xff]
    %v429 = vld [vmem:[%s3 + $0x28] sm:$0xff]
    %v430 = vld [vmem:[%s3 + $0x30] sm:$0xff]
    %v431 = vld [vmem:[%s3 + $0x38] sm:$0xff]
    %v432 = vld [vmem:[%s3 + $0x40] sm:$0xff]
    %v433 = vld [vmem:[%s3 + $0x48] sm:$0xff]
    %v434 = vld [vmem:[%s3 + $0x50] sm:$0xff]
    %v435 = vld [vmem:[%s3 + $0x58] sm:$0xff]
    %v436 = vld [vmem:[%s3 + $0x60] sm:$0xff]
    %v437 = vld [vmem:[%s3 + $0x68] sm:$0xff]
    %v438 = vld [vmem:[%s3 + $0x70] sm:$0xff]
    %v439 = vld [vmem:[%s3 + $0x78] sm:$0xff]
    %v440 = vld [vmem:[%s4] sm:$0x1]
    %v442 = vlaneseq
    %v443 = vshrl.u32 %v442, 7
    %v444 = vsub.s32 0, %v443
    %v445 = vrot.slane %v440, %v444
    %447 = vmatprep.subr.mxu0 0.0
    %448 = vmatpush1.msra.mxu0 %v439
    %449 = vmatprep.subr.mxu0 0.0
    %450 = vmatpush1.msra.mxu0 %v438
    %451 = vmatprep.subr.mxu0 0.0
    %452 = vmatpush1.msra.mxu0 %v437
    %453 = vmatprep.subr.mxu0 0.0
    %454 = vmatpush1.msra.mxu0 %v436
    %455 = vmatprep.subr.mxu0 0.0
    %456 = vmatpush1.msra.mxu0 %v435
    %457 = vmatprep.subr.mxu0 0.0
    %458 = vmatpush1.msra.mxu0 %v434
    %459 = vmatprep.subr.mxu0 0.0
    %460 = vmatpush1.msra.mxu0 %v433
    %461 = vmatprep.subr.mxu0 0.0
    %462 = vmatpush1.msra.mxu0 %v432
    %463 = vmatprep.subr.mxu0 0.0
    %464 = vmatpush1.msra.mxu0 %v431
    %465 = vmatprep.subr.mxu0 0.0
    %466 = vmatpush1.msra.mxu0 %v430
    %467 = vmatprep.subr.mxu0 0.0
    %468 = vmatpush1.msra.mxu0 %v429
    %469 = vmatprep.subr.mxu0 0.0
    %470 = vmatpush1.msra.mxu0 %v428
    %471 = vmatprep.subr.mxu0 0.0
    %472 = vmatpush1.msra.mxu0 %v427
    %473 = vmatprep.subr.mxu0 0.0
    %474 = vmatpush1.msra.mxu0 %v426
    %475 = vmatprep.subr.mxu0 0.0
    %476 = vmatpush1.msra.mxu0 %v425
    %477 = vmatprep.subr.mxu0 0.0
    %478 = vmatpush1.msra.mxu0 %v424
    %479 = vmatprep.subr.mxu0 0.0
    %480 = vmatpush2.msra.mxu0 0.0
    %481 = vmatprep.subr.mxu0 0.0
    %482 = vmatpush2.msra.mxu0 0.0
    %483 = vmatprep.subr.mxu0 0.0
    %484 = vmatpush2.msra.mxu0 0.0
    %485 = vmatprep.subr.mxu0 0.0
    %486 = vmatpush2.msra.mxu0 0.0
    %487 = vmatprep.subr.mxu0 0.0
    %488 = vmatpush2.msra.mxu0 0.0
    %489 = vmatprep.subr.mxu0 0.0
    %490 = vmatpush2.msra.mxu0 0.0
    %491 = vmatprep.subr.mxu0 0.0
    %492 = vmatpush2.msra.mxu0 0.0
    %493 = vmatprep.subr.mxu0 0.0
    %494 = vmatpush2.msra.mxu0 0.0
    %495 = vmatprep.subr.mxu0 0.0
    %496 = vmatpush2.msra.mxu0 0.0
    %497 = vmatprep.subr.mxu0 0.0
    %498 = vmatpush2.msra.mxu0 0.0
    %499 = vmatprep.subr.mxu0 0.0
    %500 = vmatpush2.msra.mxu0 0.0
    %501 = vmatprep.subr.mxu0 0.0
    %502 = vmatpush2.msra.mxu0 0.0
    %503 = vmatprep.subr.mxu0 0.0
    %504 = vmatpush2.msra.mxu0 0.0
    %505 = vmatprep.subr.mxu0 0.0
    %506 = vmatpush2.msra.mxu0 0.0
    %507 = vmatprep.subr.mxu0 0.0
    %508 = vmatpush2.msra.mxu0 0.0
    %509 = vmatprep.subr.mxu0 0.0
    %510 = vmatpush2.msra.mxu0 0.0
    %511 = vmatprep.mubr.f32.mxu0 0.0
    %512 = vmatmul.mubr.f32.gmra.mxu0 %v392
    %v513 = vpop.f32.mrf.mxu0
    %v514 = vadd.f32 %v445, %v513
    %v515 = vpop.f32.mrf.mxu0
    %516 = vmatprep.mubr.f32.mxu0 0.0
    %517 = vmatmul.mubr.f32.gmra.mxu0 %v393
    %v518 = vpop.f32.mrf.mxu0
    %v519 = vadd.f32 %v445, %v518
    %v520 = vpop.f32.mrf.mxu0
    %521 = vmatprep.mubr.f32.mxu0 0.0
    %522 = vmatmul.mubr.f32.gmra.mxu0 %v394
    %v523 = vpop.f32.mrf.mxu0
    %v524 = vadd.f32 %v445, %v523
    %v525 = vpop.f32.mrf.mxu0
    %526 = vmatprep.mubr.f32.mxu0 0.0
    %527 = vmatmul.mubr.f32.gmra.mxu0 %v395
    %v528 = vpop.f32.mrf.mxu0
    %v529 = vadd.f32 %v445, %v528
    %v530 = vpop.f32.mrf.mxu0
    %531 = vmatprep.mubr.f32.mxu0 0.0
    %532 = vmatmul.mubr.f32.gmra.mxu0 %v396
    %v533 = vpop.f32.mrf.mxu0
    %v534 = vadd.f32 %v445, %v533
    %v535 = vpop.f32.mrf.mxu0
    %536 = vmatprep.mubr.f32.mxu0 0.0
    %537 = vmatmul.mubr.f32.gmra.mxu0 %v397
    %v538 = vpop.f32.mrf.mxu0
    %v539 = vadd.f32 %v445, %v538
    %v540 = vpop.f32.mrf.mxu0
    %541 = vmatprep.mubr.f32.mxu0 0.0
    %542 = vmatmul.mubr.f32.gmra.mxu0 %v398
    %v543 = vpop.f32.mrf.mxu0
    %v544 = vadd.f32 %v445, %v543
    %v545 = vpop.f32.mrf.mxu0
    %546 = vmatprep.mubr.f32.mxu0 0.0
    %547 = vmatmul.mubr.f32.gmra.mxu0 %v399
    %v548 = vpop.f32.mrf.mxu0
    %v549 = vadd.f32 %v445, %v548
    %v550 = vpop.f32.mrf.mxu0
    %551 = vmatprep.mubr.f32.mxu0 0.0
    %552 = vmatmul.mubr.f32.gmra.mxu0 %v400
    %v553 = vpop.f32.mrf.mxu0
    %v554 = vadd.f32 %v445, %v553
    %v555 = vpop.f32.mrf.mxu0
    %556 = vmatprep.mubr.f32.mxu0 0.0
    %557 = vmatmul.mubr.f32.gmra.mxu0 %v401
    %v558 = vpop.f32.mrf.mxu0
    %v559 = vadd.f32 %v445, %v558
    %v560 = vpop.f32.mrf.mxu0
    %561 = vmatprep.mubr.f32.mxu0 0.0
    %562 = vmatmul.mubr.f32.gmra.mxu0 %v402
    %v563 = vpop.f32.mrf.mxu0
    %v564 = vadd.f32 %v445, %v563
    %v565 = vpop.f32.mrf.mxu0
    %566 = vmatprep.mubr.f32.mxu0 0.0
    %567 = vmatmul.mubr.f32.gmra.mxu0 %v403
    %v568 = vpop.f32.mrf.mxu0
    %v569 = vadd.f32 %v445, %v568
    %v570 = vpop.f32.mrf.mxu0
    %571 = vmatprep.mubr.f32.mxu0 0.0
    %572 = vmatmul.mubr.f32.gmra.mxu0 %v404
    %v573 = vpop.f32.mrf.mxu0
    %v574 = vadd.f32 %v445, %v573
    %v575 = vpop.f32.mrf.mxu0
    %576 = vmatprep.mubr.f32.mxu0 0.0
    %577 = vmatmul.mubr.f32.gmra.mxu0 %v405
    %v578 = vpop.f32.mrf.mxu0
    %v579 = vadd.f32 %v445, %v578
    %v580 = vpop.f32.mrf.mxu0
    %581 = vmatprep.mubr.f32.mxu0 0.0
    %582 = vmatmul.mubr.f32.gmra.mxu0 %v406
    %v583 = vpop.f32.mrf.mxu0
    %v584 = vadd.f32 %v445, %v583
    %v585 = vpop.f32.mrf.mxu0
    %586 = vmatprep.mubr.f32.mxu0 0.0
    %587 = vmatmul.mubr.f32.gmra.mxu0 %v407
    %v588 = vpop.f32.mrf.mxu0
    %v589 = vadd.f32 %v445, %v588
    %v590 = vpop.f32.mrf.mxu0
    %591 = vmatprep.mubr.f32.mxu0 0.0
    %592 = vmatmul.mubr.f32.gmra.mxu0 %v408
    %v593 = vpop.f32.mrf.mxu0
    %v594 = vadd.f32 %v445, %v593
    %v595 = vpop.f32.mrf.mxu0
    %596 = vmatprep.mubr.f32.mxu0 0.0
    %597 = vmatmul.mubr.f32.gmra.mxu0 %v409
    %v598 = vpop.f32.mrf.mxu0
    %v599 = vadd.f32 %v445, %v598
    %v600 = vpop.f32.mrf.mxu0
    %601 = vmatprep.mubr.f32.mxu0 0.0
    %602 = vmatmul.mubr.f32.gmra.mxu0 %v410
    %v603 = vpop.f32.mrf.mxu0
    %v604 = vadd.f32 %v445, %v603
    %v605 = vpop.f32.mrf.mxu0
    %606 = vmatprep.mubr.f32.mxu0 0.0
    %607 = vmatmul.mubr.f32.gmra.mxu0 %v411
    %v608 = vpop.f32.mrf.mxu0
    %v609 = vadd.f32 %v445, %v608
    %v610 = vpop.f32.mrf.mxu0
    %611 = vmatprep.mubr.f32.mxu0 0.0
    %612 = vmatmul.mubr.f32.gmra.mxu0 %v412
    %v613 = vpop.f32.mrf.mxu0
    %v614 = vadd.f32 %v445, %v613
    %v615 = vpop.f32.mrf.mxu0
    %616 = vmatprep.mubr.f32.mxu0 0.0
    %617 = vmatmul.mubr.f32.gmra.mxu0 %v413
    %v618 = vpop.f32.mrf.mxu0
    %v619 = vadd.f32 %v445, %v618
    %v620 = vpop.f32.mrf.mxu0
    %621 = vmatprep.mubr.f32.mxu0 0.0
    %622 = vmatmul.mubr.f32.gmra.mxu0 %v414
    %v623 = vpop.f32.mrf.mxu0
    %v624 = vadd.f32 %v445, %v623
    %v625 = vpop.f32.mrf.mxu0
    %626 = vmatprep.mubr.f32.mxu0 0.0
    %627 = vmatmul.mubr.f32.gmra.mxu0 %v415
    %v628 = vpop.f32.mrf.mxu0
    %v629 = vadd.f32 %v445, %v628
    %v630 = vpop.f32.mrf.mxu0
    %631 = vmatprep.mubr.f32.mxu0 0.0
    %632 = vmatmul.mubr.f32.gmra.mxu0 %v416
    %v633 = vpop.f32.mrf.mxu0
    %v634 = vadd.f32 %v445, %v633
    %v635 = vpop.f32.mrf.mxu0
    %636 = vmatprep.mubr.f32.mxu0 0.0
    %637 = vmatmul.mubr.f32.gmra.mxu0 %v417
    %v638 = vpop.f32.mrf.mxu0
    %v639 = vadd.f32 %v445, %v638
    %v640 = vpop.f32.mrf.mxu0
    %641 = vmatprep.mubr.f32.mxu0 0.0
    %642 = vmatmul.mubr.f32.gmra.mxu0 %v418
    %v643 = vpop.f32.mrf.mxu0
    %v644 = vadd.f32 %v445, %v643
    %v645 = vpop.f32.mrf.mxu0
    %646 = vmatprep.mubr.f32.mxu0 0.0
    %647 = vmatmul.mubr.f32.gmra.mxu0 %v419
    %v648 = vpop.f32.mrf.mxu0
    %v649 = vadd.f32 %v445, %v648
    %v650 = vpop.f32.mrf.mxu0
    %651 = vmatprep.mubr.f32.mxu0 0.0
    %652 = vmatmul.mubr.f32.gmra.mxu0 %v420
    %v653 = vpop.f32.mrf.mxu0
    %v654 = vadd.f32 %v445, %v653
    %v655 = vpop.f32.mrf.mxu0
    %656 = vmatprep.mubr.f32.mxu0 0.0
    %657 = vmatmul.mubr.f32.gmra.mxu0 %v421
    %v658 = vpop.f32.mrf.mxu0
    %v659 = vadd.f32 %v445, %v658
    %v660 = vpop.f32.mrf.mxu0
    %661 = vmatprep.mubr.f32.mxu0 0.0
    %662 = vmatmul.mubr.f32.gmra.mxu0 %v422
    %v663 = vpop.f32.mrf.mxu0
    %v664 = vadd.f32 %v445, %v663
    %v665 = vpop.f32.mrf.mxu0
    %666 = vmatprep.mubr.f32.mxu0 0.0
    %667 = vmatmul.mubr.f32.gmra.mxu0 %v423
    %v668 = vpop.f32.mrf.mxu0
    %v669 = vadd.f32 %v445, %v668
    %v670 = vpop.f32.mrf.mxu0
    %671 = vdwg.mxu0
    %v672 = vmax.f32 %v514, 0.0
    %v673 = vmax.f32 %v519, 0.0
    %v674 = vmax.f32 %v524, 0.0
    %v675 = vmax.f32 %v529, 0.0
    %v676 = vmax.f32 %v534, 0.0
    %v677 = vmax.f32 %v539, 0.0
    %v678 = vmax.f32 %v544, 0.0
    %v679 = vmax.f32 %v549, 0.0
    %v680 = vmax.f32 %v554, 0.0
    %v681 = vmax.f32 %v559, 0.0
    %v682 = vmax.f32 %v564, 0.0
    %v683 = vmax.f32 %v569, 0.0
    %v684 = vmax.f32 %v574, 0.0
    %v685 = vmax.f32 %v579, 0.0
    %v686 = vmax.f32 %v584, 0.0
    %v687 = vmax.f32 %v589, 0.0
    %v688 = vmax.f32 %v594, 0.0
    %v689 = vmax.f32 %v599, 0.0
    %v690 = vmax.f32 %v604, 0.0
    %v691 = vmax.f32 %v609, 0.0
    %v692 = vmax.f32 %v614, 0.0
    %v693 = vmax.f32 %v619, 0.0
    %v694 = vmax.f32 %v624, 0.0
    %v695 = vmax.f32 %v629, 0.0
    %v696 = vmax.f32 %v634, 0.0
    %v697 = vmax.f32 %v639, 0.0
    %v698 = vmax.f32 %v644, 0.0
    %v699 = vmax.f32 %v649, 0.0
    %v700 = vmax.f32 %v654, 0.0
    %v701 = vmax.f32 %v659, 0.0
    %v702 = vmax.f32 %v664, 0.0
    %v703 = vmax.f32 %v669, 0.0
    %v704 = vld [vmem:[%s5] sm:$0xff]
    %v705 = vld [vmem:[%s5 + $0x8] sm:$0xff]
    %v706 = vld [vmem:[%s5 + $0x10] sm:$0xff]
    %v707 = vld [vmem:[%s5 + $0x18] sm:$0xff]
    %v708 = vld [vmem:[%s5 + $0x20] sm:$0xff]
    %v709 = vld [vmem:[%s5 + $0x28] sm:$0xff]
    %v710 = vld [vmem:[%s5 + $0x30] sm:$0xff]
    %v711 = vld [vmem:[%s5 + $0x38] sm:$0xff]
    %v712 = vld [vmem:[%s5 + $0x40] sm:$0xff]
    %v713 = vld [vmem:[%s5 + $0x48] sm:$0xff]
    %v714 = vld [vmem:[%s5 + $0x50] sm:$0xff]
    %v715 = vld [vmem:[%s5 + $0x58] sm:$0xff]
    %v716 = vld [vmem:[%s5 + $0x60] sm:$0xff]
    %v717 = vld [vmem:[%s5 + $0x68] sm:$0xff]
    %v718 = vld [vmem:[%s5 + $0x70] sm:$0xff]
    %v719 = vld [vmem:[%s5 + $0x78] sm:$0xff]
    %v720 = vld [vmem:[%s6] sm:$0x1]
    %v722 = vlaneseq
    %v723 = vshrl.u32 %v722, 7
    %v724 = vsub.s32 0, %v723
    %v725 = vrot.slane %v720, %v724
    %727 = vmatprep.subr.mxu0 0.0
    %728 = vmatpush1.msra.mxu0 %v719
    %729 = vmatprep.subr.mxu0 0.0
    %730 = vmatpush1.msra.mxu0 %v718
    %731 = vmatprep.subr.mxu0 0.0
    %732 = vmatpush1.msra.mxu0 %v717
    %733 = vmatprep.subr.mxu0 0.0
    %734 = vmatpush1.msra.mxu0 %v716
    %735 = vmatprep.subr.mxu0 0.0
    %736 = vmatpush1.msra.mxu0 %v715
    %737 = vmatprep.subr.mxu0 0.0
    %738 = vmatpush1.msra.mxu0 %v714
    %739 = vmatprep.subr.mxu0 0.0
    %740 = vmatpush1.msra.mxu0 %v713
    %741 = vmatprep.subr.mxu0 0.0
    %742 = vmatpush1.msra.mxu0 %v712
    %743 = vmatprep.subr.mxu0 0.0
    %744 = vmatpush1.msra.mxu0 %v711
    %745 = vmatprep.subr.mxu0 0.0
    %746 = vmatpush1.msra.mxu0 %v710
    %747 = vmatprep.subr.mxu0 0.0
    %748 = vmatpush1.msra.mxu0 %v709
    %749 = vmatprep.subr.mxu0 0.0
    %750 = vmatpush1.msra.mxu0 %v708
    %751 = vmatprep.subr.mxu0 0.0
    %752 = vmatpush1.msra.mxu0 %v707
    %753 = vmatprep.subr.mxu0 0.0
    %754 = vmatpush1.msra.mxu0 %v706
    %755 = vmatprep.subr.mxu0 0.0
    %756 = vmatpush1.msra.mxu0 %v705
    %757 = vmatprep.subr.mxu0 0.0
    %758 = vmatpush1.msra.mxu0 %v704
    %759 = vmatprep.subr.mxu0 0.0
    %760 = vmatpush2.msra.mxu0 0.0
    %761 = vmatprep.subr.mxu0 0.0
    %762 = vmatpush2.msra.mxu0 0.0
    %763 = vmatprep.subr.mxu0 0.0
    %764 = vmatpush2.msra.mxu0 0.0
    %765 = vmatprep.subr.mxu0 0.0
    %766 = vmatpush2.msra.mxu0 0.0
    %767 = vmatprep.subr.mxu0 0.0
    %768 = vmatpush2.msra.mxu0 0.0
    %769 = vmatprep.subr.mxu0 0.0
    %770 = vmatpush2.msra.mxu0 0.0
    %771 = vmatprep.subr.mxu0 0.0
    %772 = vmatpush2.msra.mxu0 0.0
    %773 = vmatprep.subr.mxu0 0.0
    %774 = vmatpush2.msra.mxu0 0.0
    %775 = vmatprep.subr.mxu0 0.0
    %776 = vmatpush2.msra.mxu0 0.0
    %777 = vmatprep.subr.mxu0 0.0
    %778 = vmatpush2.msra.mxu0 0.0
    %779 = vmatprep.subr.mxu0 0.0
    %780 = vmatpush2.msra.mxu0 0.0
    %781 = vmatprep.subr.mxu0 0.0
    %782 = vmatpush2.msra.mxu0 0.0
    %783 = vmatprep.subr.mxu0 0.0
    %784 = vmatpush2.msra.mxu0 0.0
    %785 = vmatprep.subr.mxu0 0.0
    %786 = vmatpush2.msra.mxu0 0.0
    %787 = vmatprep.subr.mxu0 0.0
    %788 = vmatpush2.msra.mxu0 0.0
    %789 = vmatprep.subr.mxu0 0.0
    %790 = vmatpush2.msra.mxu0 0.0
    %791 = vmatprep.mubr.f32.mxu0 0.0
    %792 = vmatmul.mubr.f32.gmra.mxu0 %v672
    %v793 = vpop.f32.mrf.mxu0
    %v794 = vadd.f32 %v725, %v793
    %v795 = vpop.f32.mrf.mxu0
    %796 = vmatprep.mubr.f32.mxu0 0.0
    %797 = vmatmul.mubr.f32.gmra.mxu0 %v673
    %v798 = vpop.f32.mrf.mxu0
    %v799 = vadd.f32 %v725, %v798
    %v800 = vpop.f32.mrf.mxu0
    %801 = vmatprep.mubr.f32.mxu0 0.0
    %802 = vmatmul.mubr.f32.gmra.mxu0 %v674
    %v803 = vpop.f32.mrf.mxu0
    %v804 = vadd.f32 %v725, %v803
    %v805 = vpop.f32.mrf.mxu0
    %806 = vmatprep.mubr.f32.mxu0 0.0
    %807 = vmatmul.mubr.f32.gmra.mxu0 %v675
    %v808 = vpop.f32.mrf.mxu0
    %v809 = vadd.f32 %v725, %v808
    %v810 = vpop.f32.mrf.mxu0
    %811 = vmatprep.mubr.f32.mxu0 0.0
    %812 = vmatmul.mubr.f32.gmra.mxu0 %v676
    %v813 = vpop.f32.mrf.mxu0
    %v814 = vadd.f32 %v725, %v813
    %v815 = vpop.f32.mrf.mxu0
    %816 = vmatprep.mubr.f32.mxu0 0.0
    %817 = vmatmul.mubr.f32.gmra.mxu0 %v677
    %v818 = vpop.f32.mrf.mxu0
    %v819 = vadd.f32 %v725, %v818
    %v820 = vpop.f32.mrf.mxu0
    %821 = vmatprep.mubr.f32.mxu0 0.0
    %822 = vmatmul.mubr.f32.gmra.mxu0 %v678
    %v823 = vpop.f32.mrf.mxu0
    %v824 = vadd.f32 %v725, %v823
    %v825 = vpop.f32.mrf.mxu0
    %826 = vmatprep.mubr.f32.mxu0 0.0
    %827 = vmatmul.mubr.f32.gmra.mxu0 %v679
    %v828 = vpop.f32.mrf.mxu0
    %v829 = vadd.f32 %v725, %v828
    %v830 = vpop.f32.mrf.mxu0
    %831 = vmatprep.mubr.f32.mxu0 0.0
    %832 = vmatmul.mubr.f32.gmra.mxu0 %v680
    %v833 = vpop.f32.mrf.mxu0
    %v834 = vadd.f32 %v725, %v833
    %v835 = vpop.f32.mrf.mxu0
    %836 = vmatprep.mubr.f32.mxu0 0.0
    %837 = vmatmul.mubr.f32.gmra.mxu0 %v681
    %v838 = vpop.f32.mrf.mxu0
    %v839 = vadd.f32 %v725, %v838
    %v840 = vpop.f32.mrf.mxu0
    %841 = vmatprep.mubr.f32.mxu0 0.0
    %842 = vmatmul.mubr.f32.gmra.mxu0 %v682
    %v843 = vpop.f32.mrf.mxu0
    %v844 = vadd.f32 %v725, %v843
    %v845 = vpop.f32.mrf.mxu0
    %846 = vmatprep.mubr.f32.mxu0 0.0
    %847 = vmatmul.mubr.f32.gmra.mxu0 %v683
    %v848 = vpop.f32.mrf.mxu0
    %v849 = vadd.f32 %v725, %v848
    %v850 = vpop.f32.mrf.mxu0
    %851 = vmatprep.mubr.f32.mxu0 0.0
    %852 = vmatmul.mubr.f32.gmra.mxu0 %v684
    %v853 = vpop.f32.mrf.mxu0
    %v854 = vadd.f32 %v725, %v853
    %v855 = vpop.f32.mrf.mxu0
    %856 = vmatprep.mubr.f32.mxu0 0.0
    %857 = vmatmul.mubr.f32.gmra.mxu0 %v685
    %v858 = vpop.f32.mrf.mxu0
    %v859 = vadd.f32 %v725, %v858
    %v860 = vpop.f32.mrf.mxu0
    %861 = vmatprep.mubr.f32.mxu0 0.0
    %862 = vmatmul.mubr.f32.gmra.mxu0 %v686
    %v863 = vpop.f32.mrf.mxu0
    %v864 = vadd.f32 %v725, %v863
    %v865 = vpop.f32.mrf.mxu0
    %866 = vmatprep.mubr.f32.mxu0 0.0
    %867 = vmatmul.mubr.f32.gmra.mxu0 %v687
    %v868 = vpop.f32.mrf.mxu0
    %v869 = vadd.f32 %v725, %v868
    %v870 = vpop.f32.mrf.mxu0
    %871 = vmatprep.mubr.f32.mxu0 0.0
    %872 = vmatmul.mubr.f32.gmra.mxu0 %v688
    %v873 = vpop.f32.mrf.mxu0
    %v874 = vadd.f32 %v725, %v873
    %v875 = vpop.f32.mrf.mxu0
    %876 = vmatprep.mubr.f32.mxu0 0.0
    %877 = vmatmul.mubr.f32.gmra.mxu0 %v689
    %v878 = vpop.f32.mrf.mxu0
    %v879 = vadd.f32 %v725, %v878
    %v880 = vpop.f32.mrf.mxu0
    %881 = vmatprep.mubr.f32.mxu0 0.0
    %882 = vmatmul.mubr.f32.gmra.mxu0 %v690
    %v883 = vpop.f32.mrf.mxu0
    %v884 = vadd.f32 %v725, %v883
    %v885 = vpop.f32.mrf.mxu0
    %886 = vmatprep.mubr.f32.mxu0 0.0
    %887 = vmatmul.mubr.f32.gmra.mxu0 %v691
    %v888 = vpop.f32.mrf.mxu0
    %v889 = vadd.f32 %v725, %v888
    %v890 = vpop.f32.mrf.mxu0
    %891 = vmatprep.mubr.f32.mxu0 0.0
    %892 = vmatmul.mubr.f32.gmra.mxu0 %v692
    %v893 = vpop.f32.mrf.mxu0
    %v894 = vadd.f32 %v725, %v893
    %v895 = vpop.f32.mrf.mxu0
    %896 = vmatprep.mubr.f32.mxu0 0.0
    %897 = vmatmul.mubr.f32.gmra.mxu0 %v693
    %v898 = vpop.f32.mrf.mxu0
    %v899 = vadd.f32 %v725, %v898
    %v900 = vpop.f32.mrf.mxu0
    %901 = vmatprep.mubr.f32.mxu0 0.0
    %902 = vmatmul.mubr.f32.gmra.mxu0 %v694
    %v903 = vpop.f32.mrf.mxu0
    %v904 = vadd.f32 %v725, %v903
    %v905 = vpop.f32.mrf.mxu0
    %906 = vmatprep.mubr.f32.mxu0 0.0
    %907 = vmatmul.mubr.f32.gmra.mxu0 %v695
    %v908 = vpop.f32.mrf.mxu0
    %v909 = vadd.f32 %v725, %v908
    %v910 = vpop.f32.mrf.mxu0
    %911 = vmatprep.mubr.f32.mxu0 0.0
    %912 = vmatmul.mubr.f32.gmra.mxu0 %v696
    %v913 = vpop.f32.mrf.mxu0
    %v914 = vadd.f32 %v725, %v913
    %v915 = vpop.f32.mrf.mxu0
    %916 = vmatprep.mubr.f32.mxu0 0.0
    %917 = vmatmul.mubr.f32.gmra.mxu0 %v697
    %v918 = vpop.f32.mrf.mxu0
    %v919 = vadd.f32 %v725, %v918
    %v920 = vpop.f32.mrf.mxu0
    %921 = vmatprep.mubr.f32.mxu0 0.0
    %922 = vmatmul.mubr.f32.gmra.mxu0 %v698
    %v923 = vpop.f32.mrf.mxu0
    %v924 = vadd.f32 %v725, %v923
    %v925 = vpop.f32.mrf.mxu0
    %926 = vmatprep.mubr.f32.mxu0 0.0
    %927 = vmatmul.mubr.f32.gmra.mxu0 %v699
    %v928 = vpop.f32.mrf.mxu0
    %v929 = vadd.f32 %v725, %v928
    %v930 = vpop.f32.mrf.mxu0
    %931 = vmatprep.mubr.f32.mxu0 0.0
    %932 = vmatmul.mubr.f32.gmra.mxu0 %v700
    %v933 = vpop.f32.mrf.mxu0
    %v934 = vadd.f32 %v725, %v933
    %v935 = vpop.f32.mrf.mxu0
    %936 = vmatprep.mubr.f32.mxu0 0.0
    %937 = vmatmul.mubr.f32.gmra.mxu0 %v701
    %v938 = vpop.f32.mrf.mxu0
    %v939 = vadd.f32 %v725, %v938
    %v940 = vpop.f32.mrf.mxu0
    %941 = vmatprep.mubr.f32.mxu0 0.0
    %942 = vmatmul.mubr.f32.gmra.mxu0 %v702
    %v943 = vpop.f32.mrf.mxu0
    %v944 = vadd.f32 %v725, %v943
    %v945 = vpop.f32.mrf.mxu0
    %946 = vmatprep.mubr.f32.mxu0 0.0
    %947 = vmatmul.mubr.f32.gmra.mxu0 %v703
    %v948 = vpop.f32.mrf.mxu0
    %v949 = vadd.f32 %v725, %v948
    %v950 = vpop.f32.mrf.mxu0
    %951 = vdwg.mxu0
    %952 = vst [vmem:[#allocation2] sm:$0xff] %v794
    %953 = vst [vmem:[#allocation2 + $0x8] sm:$0xff] %v799
    %954 = vst [vmem:[#allocation2 + $0x10] sm:$0xff] %v804
    %955 = vst [vmem:[#allocation2 + $0x18] sm:$0xff] %v809
    %956 = vst [vmem:[#allocation2 + $0x20] sm:$0xff] %v814
    %957 = vst [vmem:[#allocation2 + $0x28] sm:$0xff] %v819
    %958 = vst [vmem:[#allocation2 + $0x30] sm:$0xff] %v824
    %959 = vst [vmem:[#allocation2 + $0x38] sm:$0xff] %v829
    %960 = vst [vmem:[#allocation2 + $0x40] sm:$0xff] %v834
    %961 = vst [vmem:[#allocation2 + $0x48] sm:$0xff] %v839
    %962 = vst [vmem:[#allocation2 + $0x50] sm:$0xff] %v844
    %963 = vst [vmem:[#allocation2 + $0x58] sm:$0xff] %v849
    %964 = vst [vmem:[#allocation2 + $0x60] sm:$0xff] %v854
    %965 = vst [vmem:[#allocation2 + $0x68] sm:$0xff] %v859
    %966 = vst [vmem:[#allocation2 + $0x70] sm:$0xff] %v864
    %967 = vst [vmem:[#allocation2 + $0x78] sm:$0xff] %v869
    %968 = vst [vmem:[#allocation2 + $0x80] sm:$0xff] %v874
    %969 = vst [vmem:[#allocation2 + $0x88] sm:$0xff] %v879
    %970 = vst [vmem:[#allocation2 + $0x90] sm:$0xff] %v884
    %971 = vst [vmem:[#allocation2 + $0x98] sm:$0xff] %v889
    %972 = vst [vmem:[#allocation2 + $0xa0] sm:$0xff] %v894
    %973 = vst [vmem:[#allocation2 + $0xa8] sm:$0xff] %v899
    %974 = vst [vmem:[#allocation2 + $0xb0] sm:$0xff] %v904
    %975 = vst [vmem:[#allocation2 + $0xb8] sm:$0xff] %v909
    %976 = vst [vmem:[#allocation2 + $0xc0] sm:$0xff] %v914
    %977 = vst [vmem:[#allocation2 + $0xc8] sm:$0xff] %v919
    %978 = vst [vmem:[#allocation2 + $0xd0] sm:$0xff] %v924
    %979 = vst [vmem:[#allocation2 + $0xd8] sm:$0xff] %v929
    %980 = vst [vmem:[#allocation2 + $0xe0] sm:$0xff] %v934
    %981 = vst [vmem:[#allocation2 + $0xe8] sm:$0xff] %v939
    %982 = vst [vmem:[#allocation2 + $0xf0] sm:$0xff] %v944
    %983 = vst [vmem:[#allocation2 + $0xf8] sm:$0xff] %v949
    // Predicated region
    $region30: #{tpu_custom_call.1} parent=1 // pred_check
      _
    $region31: #{tpu_custom_call.1} parent=1 // pred_check_branch
      %985 = sbr.rel (0) target = $region33
    $region32: #{tpu_custom_call.1} parent=1 // pred_region
      %s987 = ssub.s32 4096, 4096
      %988 = vsyncadd [#allocation3], %s987
      %s989 = sshll.u32 [#allocation2], 4
      %s990 = int_to_ptr.vmem [resolvable:$true] %s989
      %995 = dma.vmem_to_hbm [thread:$0]  %s990, 4096, %s7, [#allocation3], 128, 128, 8
    $region33: #{tpu_custom_call.1} parent=1 // pred_fallthru
      _
    // Predicated region
    $region34: #{tpu_custom_call.1} parent=1 // pred_check
      _
    $region35: #{tpu_custom_call.1} parent=1 // pred_check_branch
      %997 = sbr.rel (0) target = $region37
    $region36: #{tpu_custom_call.1} parent=1 // pred_region
      %998 = dma.done [#allocation3], 4096
    $region37: #{tpu_custom_call.1} parent=1 // pred_fallthru
      _
    %999 = vsyncpa [#allocation3], 1

// kernel: tpu_custom_call.1
$region0: #{tpu_custom_call.1}
  #allocation0 [shape = 'u32[]', space=smem, size = 0x4, offset = 0x4, fixed_abs, tag = 'smem constant byte address 0x4 - core index']
  #allocation1 [shape = 'u32[144,128]{1,0:T(1,128)}', space=vmem, size = 0x12000, scoped, tag = 'internal scratch']
  %s0 = inlined_call_operand.vmem [shape: f32[256,32], index: 0, kind: input, shape index: {}]
  %s1 = inlined_call_operand.vmem [shape: f32[32,128], index: 1, kind: input, shape index: {}]
  %s2 = inlined_call_operand.vmem [shape: f32[1,128], index: 2, kind: input, shape index: {}]
  %s3 = inlined_call_operand.vmem [shape: f32[128,128], index: 3, kind: input, shape index: {}]
  %s4 = inlined_call_operand.vmem [shape: f32[1,128], index: 4, kind: input, shape index: {}]
  %s5 = inlined_call_operand.vmem [shape: f32[128,128], index: 5, kind: input, shape index: {}]
  %s6 = inlined_call_operand.vmem [shape: f32[1,128], index: 6, kind: input, shape index: {}]
  %s7 = inlined_call_operand.hbm [shape: f32[256,128], index: 7, kind: output, shape index: {}]
  %s8 = sld [smem:[#allocation0]]
  $region38: #{tpu_custom_call.1} parent=0
    _
  %s10 = ssub.s32 1, %s8
  %s11 = scalar_select 0, %s10, %s8
  $region1: #{tpu_custom_call.1} parent=0
    #allocation2 [shape = 'u8[131072]{0}', space=vmem, size = 0x20000, scoped, tag = 'output window, operand 0, single buffered']
    #allocation3 [shape = 's32[1]{0}', space=sflag, size = 0x4, scoped, tag = 'scoped memory for tpu_custom_call.1']
    %12 = vsyncpa [#allocation3], 0
    // Predicated region
    $region2: #{tpu_custom_call.1} parent=1 // pred_check
      _
    $region3: #{tpu_custom_call.1} parent=1 // pred_check_branch
      %14 = sbr.rel (0) target = $region5
    $region4: #{tpu_custom_call.1} parent=1 // pred_region
      _
    $region5: #{tpu_custom_call.1} parent=1 // pred_fallthru
      _
    // Predicated region
    $region6: #{tpu_custom_call.1} parent=1 // pred_check
      _
    $region7: #{tpu_custom_call.1} parent=1 // pred_check_branch
      %16 = sbr.rel (0) target = $region9
    $region8: #{tpu_custom_call.1} parent=1 // pred_region
      _
    $region9: #{tpu_custom_call.1} parent=1 // pred_fallthru
      _
    // Predicated region
    $region10: #{tpu_custom_call.1} parent=1 // pred_check
      _
    $region11: #{tpu_custom_call.1} parent=1 // pred_check_branch
      %18 = sbr.rel (0) target = $region13
    $region12: #{tpu_custom_call.1} parent=1 // pred_region
      _
    $region13: #{tpu_custom_call.1} parent=1 // pred_fallthru
      _
    // Predicated region
    $region14: #{tpu_custom_call.1} parent=1 // pred_check
      _
    $region15: #{tpu_custom_call.1} parent=1 // pred_check_branch
      %20 = sbr.rel (0) target = $region17
    $region16: #{tpu_custom_call.1} parent=1 // pred_region
      _
    $region17: #{tpu_custom_call.1} parent=1 // pred_fallthru
      _
    // Predicated region
    $region18: #{tpu_custom_call.1} parent=1 // pred_check
      _
    $region19: #{tpu_custom_call.1} parent=1 // pred_check_branch
      %22 = sbr.rel (0) target = $region21
    $region20: #{tpu_custom_call.1} parent=1 // pred_region
      _
    $region21: #{tpu_custom_call.1} parent=1 // pred_fallthru
      _
    // Predicated region
    $region22: #{tpu_custom_call.1} parent=1 // pred_check
      _
    $region23: #{tpu_custom_call.1} parent=1 // pred_check_branch
      %24 = sbr.rel (0) target = $region25
    $region24: #{tpu_custom_call.1} parent=1 // pred_region
      _
    $region25: #{tpu_custom_call.1} parent=1 // pred_fallthru
      _
    // Predicated region
    $region26: #{tpu_custom_call.1} parent=1 // pred_check
      _
    $region27: #{tpu_custom_call.1} parent=1 // pred_check_branch
      %26 = sbr.rel (0) target = $region29
    $region28: #{tpu_custom_call.1} parent=1 // pred_region
      _
    $region29: #{tpu_custom_call.1} parent=1 // pred_fallthru
      _
    %v27 = vld [vmem:[%s0] sm:$0xff]
    %v28 = vld [vmem:[%s0 + $0x8] sm:$0xff]
    %v29 = vld [vmem:[%s0 + $0x10] sm:$0xff]
    %v30 = vld [vmem:[%s0 + $0x18] sm:$0xff]
    %v31 = vld [vmem:[%s0 + $0x20] sm:$0xff]
    %v32 = vld [vmem:[%s0 + $0x28] sm:$0xff]
    %v33 = vld [vmem:[%s0 + $0x30] sm:$0xff]
    %v34 = vld [vmem:[%s0 + $0x38] sm:$0xff]
    %v35 = vld [vmem:[%s0 + $0x40] sm:$0xff]
    %v36 = vld [vmem:[%s0 + $0x48] sm:$0xff]
    %v37 = vld [vmem:[%s0 + $0x50] sm:$0xff]
    %v38 = vld [vmem:[%s0 + $0x58] sm:$0xff]
    %v39 = vld [vmem:[%s0 + $0x60] sm:$0xff]
    %v40 = vld [vmem:[%s0 + $0x68] sm:$0xff]
    %v41 = vld [vmem:[%s0 + $0x70] sm:$0xff]
    %v42 = vld [vmem:[%s0 + $0x78] sm:$0xff]
    %v43 = vld [vmem:[%s0 + $0x80] sm:$0xff]
    %v44 = vld [vmem:[%s0 + $0x88] sm:$0xff]
    %v45 = vld [vmem:[%s0 + $0x90] sm:$0xff]
    %v46 = vld [vmem:[%s0 + $0x98] sm:$0xff]
    %v47 = vld [vmem:[%s0 + $0xa0] sm:$0xff]
    %v48 = vld [vmem:[%s0 + $0xa8] sm:$0xff]
    %v49 = vld [vmem:[%s0 + $0xb0] sm:$0xff]
    %v50 = vld [vmem:[%s0 + $0xb8] sm:$0xff]
    %v51 = vld [vmem:[%s0 + $0xc0] sm:$0xff]
    %v52 = vld [vmem:[%s0 + $0xc8] sm:$0xff]
    %v53 = vld [vmem:[%s0 + $0xd0] sm:$0xff]
    %v54 = vld [vmem:[%s0 + $0xd8] sm:$0xff]
    %v55 = vld [vmem:[%s0 + $0xe0] sm:$0xff]
    %v56 = vld [vmem:[%s0 + $0xe8] sm:$0xff]
    %v57 = vld [vmem:[%s0 + $0xf0] sm:$0xff]
    %v58 = vld [vmem:[%s0 + $0xf8] sm:$0xff]
    %v59 = vld [vmem:[%s1] sm:$0xff]
    %v60 = vld [vmem:[%s1 + $0x8] sm:$0xff]
    %v61 = vld [vmem:[%s1 + $0x10] sm:$0xff]
    %v62 = vld [vmem:[%s1 + $0x18] sm:$0xff]
    %v63 = vld [vmem:[%s2] sm:$0x1]
    %v65 = vlaneseq
    %v66 = vshrl.u32 %v65, 7
    %v67 = vsub.s32 0, %v66
    %v68 = vrot.slane %v63, %v67
    %vm70 = vcmask 261120
    %v72 = vsel %vm70, %v27, 0
    %v75 = vsel %vm70, %v28, 0
    %v78 = vsel %vm70, %v29, 0
    %v81 = vsel %vm70, %v30, 0
    %v84 = vsel %vm70, %v31, 0
    %v87 = vsel %vm70, %v32, 0
    %v90 = vsel %vm70, %v33, 0
    %v93 = vsel %vm70, %v34, 0
    %v96 = vsel %vm70, %v35, 0
    %v99 = vsel %vm70, %v36, 0
    %v102 = vsel %vm70, %v37, 0
    %v105 = vsel %vm70, %v38, 0
    %v108 = vsel %vm70, %v39, 0
    %v111 = vsel %vm70, %v40, 0
    %v114 = vsel %vm70, %v41, 0
    %v117 = vsel %vm70, %v42, 0
    %v120 = vsel %vm70, %v43, 0
    %v123 = vsel %vm70, %v44, 0
    %v126 = vsel %vm70, %v45, 0
    %v129 = vsel %vm70, %v46, 0
    %v132 = vsel %vm70, %v47, 0
    %v135 = vsel %vm70, %v48, 0
    %v138 = vsel %vm70, %v49, 0
    %v141 = vsel %vm70, %v50, 0
    %v144 = vsel %vm70, %v51, 0
    %v147 = vsel %vm70, %v52, 0
    %v150 = vsel %vm70, %v53, 0
    %v153 = vsel %vm70, %v54, 0
    %v156 = vsel %vm70, %v55, 0
    %v159 = vsel %vm70, %v56, 0
    %v162 = vsel %vm70, %v57, 0
    %v165 = vsel %vm70, %v58, 0
    %167 = vmatprep.subr.mxu0 0.0
    %168 = vmatpush1.msra.mxu0 0.0
    %169 = vmatprep.subr.mxu0 0.0
    %170 = vmatpush1.msra.mxu0 0.0
    %171 = vmatprep.subr.mxu0 0.0
    %172 = vmatpush1.msra.mxu0 0.0
    %173 = vmatprep.subr.mxu0 0.0
    %174 = vmatpush1.msra.mxu0 0.0
    %175 = vmatprep.subr.mxu0 0.0
    %176 = vmatpush1.msra.mxu0 0.0
    %177 = vmatprep.subr.mxu0 0.0
    %178 = vmatpush1.msra.mxu0 0.0
    %179 = vmatprep.subr.mxu0 0.0
    %180 = vmatpush1.msra.mxu0 0.0
    %181 = vmatprep.subr.mxu0 0.0
    %182 = vmatpush1.msra.mxu0 0.0
    %183 = vmatprep.subr.mxu0 0.0
    %184 = vmatpush1.msra.mxu0 0.0
    %185 = vmatprep.subr.mxu0 0.0
    %186 = vmatpush1.msra.mxu0 0.0
    %187 = vmatprep.subr.mxu0 0.0
    %188 = vmatpush1.msra.mxu0 0.0
    %189 = vmatprep.subr.mxu0 0.0
    %190 = vmatpush1.msra.mxu0 0.0
    %191 = vmatprep.subr.mxu0 0.0
    %192 = vmatpush1.msra.mxu0 %v62
    %193 = vmatprep.subr.mxu0 0.0
    %194 = vmatpush1.msra.mxu0 %v61
    %195 = vmatprep.subr.mxu0 0.0
    %196 = vmatpush1.msra.mxu0 %v60
    %197 = vmatprep.subr.mxu0 0.0
    %198 = vmatpush1.msra.mxu0 %v59
    %199 = vmatprep.subr.mxu0 0.0
    %200 = vmatpush2.msra.mxu0 0.0
    %201 = vmatprep.subr.mxu0 0.0
    %202 = vmatpush2.msra.mxu0 0.0
    %203 = vmatprep.subr.mxu0 0.0
    %204 = vmatpush2.msra.mxu0 0.0
    %205 = vmatprep.subr.mxu0 0.0
    %206 = vmatpush2.msra.mxu0 0.0
    %207 = vmatprep.subr.mxu0 0.0
    %208 = vmatpush2.msra.mxu0 0.0
    %209 = vmatprep.subr.mxu0 0.0
    %210 = vmatpush2.msra.mxu0 0.0
    %211 = vmatprep.subr.mxu0 0.0
    %212 = vmatpush2.msra.mxu0 0.0
    %213 = vmatprep.subr.mxu0 0.0
    %214 = vmatpush2.msra.mxu0 0.0
    %215 = vmatprep.subr.mxu0 0.0
    %216 = vmatpush2.msra.mxu0 0.0
    %217 = vmatprep.subr.mxu0 0.0
    %218 = vmatpush2.msra.mxu0 0.0
    %219 = vmatprep.subr.mxu0 0.0
    %220 = vmatpush2.msra.mxu0 0.0
    %221 = vmatprep.subr.mxu0 0.0
    %222 = vmatpush2.msra.mxu0 0.0
    %223 = vmatprep.subr.mxu0 0.0
    %224 = vmatpush2.msra.mxu0 0.0
    %225 = vmatprep.subr.mxu0 0.0
    %226 = vmatpush2.msra.mxu0 0.0
    %227 = vmatprep.subr.mxu0 0.0
    %228 = vmatpush2.msra.mxu0 0.0
    %229 = vmatprep.subr.mxu0 0.0
    %230 = vmatpush2.msra.mxu0 0.0
    %231 = vmatprep.mubr.f32.mxu0 0.0
    %232 = vmatmul.mubr.f32.gmra.mxu0 %v72
    %v233 = vpop.f32.mrf.mxu0
    %v234 = vadd.f32 %v68, %v233
    %v235 = vpop.f32.mrf.mxu0
    %236 = vmatprep.mubr.f32.mxu0 0.0
    %237 = vmatmul.mubr.f32.gmra.mxu0 %v75
    %v238 = vpop.f32.mrf.mxu0
    %v239 = vadd.f32 %v68, %v238
    %v240 = vpop.f32.mrf.mxu0
    %241 = vmatprep.mubr.f32.mxu0 0.0
    %242 = vmatmul.mubr.f32.gmra.mxu0 %v78
    %v243 = vpop.f32.mrf.mxu0
    %v244 = vadd.f32 %v68, %v243
    %v245 = vpop.f32.mrf.mxu0
    %246 = vmatprep.mubr.f32.mxu0 0.0
    %247 = vmatmul.mubr.f32.gmra.mxu0 %v81
    %v248 = vpop.f32.mrf.mxu0
    %v249 = vadd.f32 %v68, %v248
    %v250 = vpop.f32.mrf.mxu0
    %251 = vmatprep.mubr.f32.mxu0 0.0
    %252 = vmatmul.mubr.f32.gmra.mxu0 %v84
    %v253 = vpop.f32.mrf.mxu0
    %v254 = vadd.f32 %v68, %v253
    %v255 = vpop.f32.mrf.mxu0
    %256 = vmatprep.mubr.f32.mxu0 0.0
    %257 = vmatmul.mubr.f32.gmra.mxu0 %v87
    %v258 = vpop.f32.mrf.mxu0
    %v259 = vadd.f32 %v68, %v258
    %v260 = vpop.f32.mrf.mxu0
    %261 = vmatprep.mubr.f32.mxu0 0.0
    %262 = vmatmul.mubr.f32.gmra.mxu0 %v90
    %v263 = vpop.f32.mrf.mxu0
    %v264 = vadd.f32 %v68, %v263
    %v265 = vpop.f32.mrf.mxu0
    %266 = vmatprep.mubr.f32.mxu0 0.0
    %267 = vmatmul.mubr.f32.gmra.mxu0 %v93
    %v268 = vpop.f32.mrf.mxu0
    %v269 = vadd.f32 %v68, %v268
    %v270 = vpop.f32.mrf.mxu0
    %271 = vmatprep.mubr.f32.mxu0 0.0
    %272 = vmatmul.mubr.f32.gmra.mxu0 %v96
    %v273 = vpop.f32.mrf.mxu0
    %v274 = vadd.f32 %v68, %v273
    %v275 = vpop.f32.mrf.mxu0
    %276 = vmatprep.mubr.f32.mxu0 0.0
    %277 = vmatmul.mubr.f32.gmra.mxu0 %v99
    %v278 = vpop.f32.mrf.mxu0
    %v279 = vadd.f32 %v68, %v278
    %v280 = vpop.f32.mrf.mxu0
    %281 = vmatprep.mubr.f32.mxu0 0.0
    %282 = vmatmul.mubr.f32.gmra.mxu0 %v102
    %v283 = vpop.f32.mrf.mxu0
    %v284 = vadd.f32 %v68, %v283
    %v285 = vpop.f32.mrf.mxu0
    %286 = vmatprep.mubr.f32.mxu0 0.0
    %287 = vmatmul.mubr.f32.gmra.mxu0 %v105
    %v288 = vpop.f32.mrf.mxu0
    %v289 = vadd.f32 %v68, %v288
    %v290 = vpop.f32.mrf.mxu0
    %291 = vmatprep.mubr.f32.mxu0 0.0
    %292 = vmatmul.mubr.f32.gmra.mxu0 %v108
    %v293 = vpop.f32.mrf.mxu0
    %v294 = vadd.f32 %v68, %v293
    %v295 = vpop.f32.mrf.mxu0
    %296 = vmatprep.mubr.f32.mxu0 0.0
    %297 = vmatmul.mubr.f32.gmra.mxu0 %v111
    %v298 = vpop.f32.mrf.mxu0
    %v299 = vadd.f32 %v68, %v298
    %v300 = vpop.f32.mrf.mxu0
    %301 = vmatprep.mubr.f32.mxu0 0.0
    %302 = vmatmul.mubr.f32.gmra.mxu0 %v114
    %v303 = vpop.f32.mrf.mxu0
    %v304 = vadd.f32 %v68, %v303
    %v305 = vpop.f32.mrf.mxu0
    %306 = vmatprep.mubr.f32.mxu0 0.0
    %307 = vmatmul.mubr.f32.gmra.mxu0 %v117
    %v308 = vpop.f32.mrf.mxu0
    %v309 = vadd.f32 %v68, %v308
    %v310 = vpop.f32.mrf.mxu0
    %311 = vmatprep.mubr.f32.mxu0 0.0
    %312 = vmatmul.mubr.f32.gmra.mxu0 %v120
    %v313 = vpop.f32.mrf.mxu0
    %v314 = vadd.f32 %v68, %v313
    %v315 = vpop.f32.mrf.mxu0
    %316 = vmatprep.mubr.f32.mxu0 0.0
    %317 = vmatmul.mubr.f32.gmra.mxu0 %v123
    %v318 = vpop.f32.mrf.mxu0
    %v319 = vadd.f32 %v68, %v318
    %v320 = vpop.f32.mrf.mxu0
    %321 = vmatprep.mubr.f32.mxu0 0.0
    %322 = vmatmul.mubr.f32.gmra.mxu0 %v126
    %v323 = vpop.f32.mrf.mxu0
    %v324 = vadd.f32 %v68, %v323
    %v325 = vpop.f32.mrf.mxu0
    %326 = vmatprep.mubr.f32.mxu0 0.0
    %327 = vmatmul.mubr.f32.gmra.mxu0 %v129
    %v328 = vpop.f32.mrf.mxu0
    %v329 = vadd.f32 %v68, %v328
    %v330 = vpop.f32.mrf.mxu0
    %331 = vmatprep.mubr.f32.mxu0 0.0
    %332 = vmatmul.mubr.f32.gmra.mxu0 %v132
    %v333 = vpop.f32.mrf.mxu0
    %v334 = vadd.f32 %v68, %v333
    %v335 = vpop.f32.mrf.mxu0
    %336 = vmatprep.mubr.f32.mxu0 0.0
    %337 = vmatmul.mubr.f32.gmra.mxu0 %v135
    %v338 = vpop.f32.mrf.mxu0
    %v339 = vadd.f32 %v68, %v338
    %v340 = vpop.f32.mrf.mxu0
    %341 = vmatprep.mubr.f32.mxu0 0.0
    %342 = vmatmul.mubr.f32.gmra.mxu0 %v138
    %v343 = vpop.f32.mrf.mxu0
    %v344 = vadd.f32 %v68, %v343
    %v345 = vpop.f32.mrf.mxu0
    %346 = vmatprep.mubr.f32.mxu0 0.0
    %347 = vmatmul.mubr.f32.gmra.mxu0 %v141
    %v348 = vpop.f32.mrf.mxu0
    %v349 = vadd.f32 %v68, %v348
    %v350 = vpop.f32.mrf.mxu0
    %351 = vmatprep.mubr.f32.mxu0 0.0
    %352 = vmatmul.mubr.f32.gmra.mxu0 %v144
    %v353 = vpop.f32.mrf.mxu0
    %v354 = vadd.f32 %v68, %v353
    %v355 = vpop.f32.mrf.mxu0
    %356 = vmatprep.mubr.f32.mxu0 0.0
    %357 = vmatmul.mubr.f32.gmra.mxu0 %v147
    %v358 = vpop.f32.mrf.mxu0
    %v359 = vadd.f32 %v68, %v358
    %v360 = vpop.f32.mrf.mxu0
    %361 = vmatprep.mubr.f32.mxu0 0.0
    %362 = vmatmul.mubr.f32.gmra.mxu0 %v150
    %v363 = vpop.f32.mrf.mxu0
    %v364 = vadd.f32 %v68, %v363
    %v365 = vpop.f32.mrf.mxu0
    %366 = vmatprep.mubr.f32.mxu0 0.0
    %367 = vmatmul.mubr.f32.gmra.mxu0 %v153
    %v368 = vpop.f32.mrf.mxu0
    %v369 = vadd.f32 %v68, %v368
    %v370 = vpop.f32.mrf.mxu0
    %371 = vmatprep.mubr.f32.mxu0 0.0
    %372 = vmatmul.mubr.f32.gmra.mxu0 %v156
    %v373 = vpop.f32.mrf.mxu0
    %v374 = vadd.f32 %v68, %v373
    %v375 = vpop.f32.mrf.mxu0
    %376 = vmatprep.mubr.f32.mxu0 0.0
    %377 = vmatmul.mubr.f32.gmra.mxu0 %v159
    %v378 = vpop.f32.mrf.mxu0
    %v379 = vadd.f32 %v68, %v378
    %v380 = vpop.f32.mrf.mxu0
    %381 = vmatprep.mubr.f32.mxu0 0.0
    %382 = vmatmul.mubr.f32.gmra.mxu0 %v162
    %v383 = vpop.f32.mrf.mxu0
    %v384 = vadd.f32 %v68, %v383
    %v385 = vpop.f32.mrf.mxu0
    %386 = vmatprep.mubr.f32.mxu0 0.0
    %387 = vmatmul.mubr.f32.gmra.mxu0 %v165
    %v388 = vpop.f32.mrf.mxu0
    %v389 = vadd.f32 %v68, %v388
    %v390 = vpop.f32.mrf.mxu0
    %391 = vdwg.mxu0
    %v392 = vmax.f32 %v234, 0.0
    %v393 = vmax.f32 %v239, 0.0
    %v394 = vmax.f32 %v244, 0.0
    %v395 = vmax.f32 %v249, 0.0
    %v396 = vmax.f32 %v254, 0.0
    %v397 = vmax.f32 %v259, 0.0
    %v398 = vmax.f32 %v264, 0.0
    %v399 = vmax.f32 %v269, 0.0
    %v400 = vmax.f32 %v274, 0.0
    %v401 = vmax.f32 %v279, 0.0
    %v402 = vmax.f32 %v284, 0.0
    %v403 = vmax.f32 %v289, 0.0
    %v404 = vmax.f32 %v294, 0.0
    %v405 = vmax.f32 %v299, 0.0
    %v406 = vmax.f32 %v304, 0.0
    %v407 = vmax.f32 %v309, 0.0
    %v408 = vmax.f32 %v314, 0.0
    %v409 = vmax.f32 %v319, 0.0
    %v410 = vmax.f32 %v324, 0.0
    %v411 = vmax.f32 %v329, 0.0
    %v412 = vmax.f32 %v334, 0.0
    %v413 = vmax.f32 %v339, 0.0
    %v414 = vmax.f32 %v344, 0.0
    %v415 = vmax.f32 %v349, 0.0
    %v416 = vmax.f32 %v354, 0.0
    %v417 = vmax.f32 %v359, 0.0
    %v418 = vmax.f32 %v364, 0.0
    %v419 = vmax.f32 %v369, 0.0
    %v420 = vmax.f32 %v374, 0.0
    %v421 = vmax.f32 %v379, 0.0
    %v422 = vmax.f32 %v384, 0.0
    %v423 = vmax.f32 %v389, 0.0
    %v424 = vld [vmem:[%s3] sm:$0xff]
    %v425 = vld [vmem:[%s3 + $0x8] sm:$0xff]
    %v426 = vld [vmem:[%s3 + $0x10] sm:$0xff]
    %v427 = vld [vmem:[%s3 + $0x18] sm:$0xff]
    %v428 = vld [vmem:[%s3 + $0x20] sm:$0xff]
    %v429 = vld [vmem:[%s3 + $0x28] sm:$0xff]
    %v430 = vld [vmem:[%s3 + $0x30] sm:$0xff]
    %v431 = vld [vmem:[%s3 + $0x38] sm:$0xff]
    %v432 = vld [vmem:[%s3 + $0x40] sm:$0xff]
    %v433 = vld [vmem:[%s3 + $0x48] sm:$0xff]
    %v434 = vld [vmem:[%s3 + $0x50] sm:$0xff]
    %v435 = vld [vmem:[%s3 + $0x58] sm:$0xff]
    %v436 = vld [vmem:[%s3 + $0x60] sm:$0xff]
    %v437 = vld [vmem:[%s3 + $0x68] sm:$0xff]
    %v438 = vld [vmem:[%s3 + $0x70] sm:$0xff]
    %v439 = vld [vmem:[%s3 + $0x78] sm:$0xff]
    %v440 = vld [vmem:[%s4] sm:$0x1]
    %v442 = vlaneseq
    %v443 = vshrl.u32 %v442, 7
    %v444 = vsub.s32 0, %v443
    %v445 = vrot.slane %v440, %v444
    %447 = vmatprep.subr.mxu0 0.0
    %448 = vmatpush1.msra.mxu0 %v439
    %449 = vmatprep.subr.mxu0 0.0
    %450 = vmatpush1.msra.mxu0 %v438
    %451 = vmatprep.subr.mxu0 0.0
    %452 = vmatpush1.msra.mxu0 %v437
    %453 = vmatprep.subr.mxu0 0.0
    %454 = vmatpush1.msra.mxu0 %v436
    %455 = vmatprep.subr.mxu0 0.0
    %456 = vmatpush1.msra.mxu0 %v435
    %457 = vmatprep.subr.mxu0 0.0
    %458 = vmatpush1.msra.mxu0 %v434
    %459 = vmatprep.subr.mxu0 0.0
    %460 = vmatpush1.msra.mxu0 %v433
    %461 = vmatprep.subr.mxu0 0.0
    %462 = vmatpush1.msra.mxu0 %v432
    %463 = vmatprep.subr.mxu0 0.0
    %464 = vmatpush1.msra.mxu0 %v431
    %465 = vmatprep.subr.mxu0 0.0
    %466 = vmatpush1.msra.mxu0 %v430
    %467 = vmatprep.subr.mxu0 0.0
    %468 = vmatpush1.msra.mxu0 %v429
    %469 = vmatprep.subr.mxu0 0.0
    %470 = vmatpush1.msra.mxu0 %v428
    %471 = vmatprep.subr.mxu0 0.0
    %472 = vmatpush1.msra.mxu0 %v427
    %473 = vmatprep.subr.mxu0 0.0
    %474 = vmatpush1.msra.mxu0 %v426
    %475 = vmatprep.subr.mxu0 0.0
    %476 = vmatpush1.msra.mxu0 %v425
    %477 = vmatprep.subr.mxu0 0.0
    %478 = vmatpush1.msra.mxu0 %v424
    %479 = vmatprep.subr.mxu0 0.0
    %480 = vmatpush2.msra.mxu0 0.0
    %481 = vmatprep.subr.mxu0 0.0
    %482 = vmatpush2.msra.mxu0 0.0
    %483 = vmatprep.subr.mxu0 0.0
    %484 = vmatpush2.msra.mxu0 0.0
    %485 = vmatprep.subr.mxu0 0.0
    %486 = vmatpush2.msra.mxu0 0.0
    %487 = vmatprep.subr.mxu0 0.0
    %488 = vmatpush2.msra.mxu0 0.0
    %489 = vmatprep.subr.mxu0 0.0
    %490 = vmatpush2.msra.mxu0 0.0
    %491 = vmatprep.subr.mxu0 0.0
    %492 = vmatpush2.msra.mxu0 0.0
    %493 = vmatprep.subr.mxu0 0.0
    %494 = vmatpush2.msra.mxu0 0.0
    %495 = vmatprep.subr.mxu0 0.0
    %496 = vmatpush2.msra.mxu0 0.0
    %497 = vmatprep.subr.mxu0 0.0
    %498 = vmatpush2.msra.mxu0 0.0
    %499 = vmatprep.subr.mxu0 0.0
    %500 = vmatpush2.msra.mxu0 0.0
    %501 = vmatprep.subr.mxu0 0.0
    %502 = vmatpush2.msra.mxu0 0.0
    %503 = vmatprep.subr.mxu0 0.0
    %504 = vmatpush2.msra.mxu0 0.0
    %505 = vmatprep.subr.mxu0 0.0
    %506 = vmatpush2.msra.mxu0 0.0
    %507 = vmatprep.subr.mxu0 0.0
    %508 = vmatpush2.msra.mxu0 0.0
    %509 = vmatprep.subr.mxu0 0.0
    %510 = vmatpush2.msra.mxu0 0.0
    %511 = vmatprep.mubr.f32.mxu0 0.0
    %512 = vmatmul.mubr.f32.gmra.mxu0 %v392
    %v513 = vpop.f32.mrf.mxu0
    %v514 = vadd.f32 %v445, %v513
    %v515 = vpop.f32.mrf.mxu0
    %516 = vmatprep.mubr.f32.mxu0 0.0
    %517 = vmatmul.mubr.f32.gmra.mxu0 %v393
    %v518 = vpop.f32.mrf.mxu0
    %v519 = vadd.f32 %v445, %v518
    %v520 = vpop.f32.mrf.mxu0
    %521 = vmatprep.mubr.f32.mxu0 0.0
    %522 = vmatmul.mubr.f32.gmra.mxu0 %v394
    %v523 = vpop.f32.mrf.mxu0
    %v524 = vadd.f32 %v445, %v523
    %v525 = vpop.f32.mrf.mxu0
    %526 = vmatprep.mubr.f32.mxu0 0.0
    %527 = vmatmul.mubr.f32.gmra.mxu0 %v395
    %v528 = vpop.f32.mrf.mxu0
    %v529 = vadd.f32 %v445, %v528
    %v530 = vpop.f32.mrf.mxu0
    %531 = vmatprep.mubr.f32.mxu0 0.0
    %532 = vmatmul.mubr.f32.gmra.mxu0 %v396
    %v533 = vpop.f32.mrf.mxu0
    %v534 = vadd.f32 %v445, %v533
    %v535 = vpop.f32.mrf.mxu0
    %536 = vmatprep.mubr.f32.mxu0 0.0
    %537 = vmatmul.mubr.f32.gmra.mxu0 %v397
    %v538 = vpop.f32.mrf.mxu0
    %v539 = vadd.f32 %v445, %v538
    %v540 = vpop.f32.mrf.mxu0
    %541 = vmatprep.mubr.f32.mxu0 0.0
    %542 = vmatmul.mubr.f32.gmra.mxu0 %v398
    %v543 = vpop.f32.mrf.mxu0
    %v544 = vadd.f32 %v445, %v543
    %v545 = vpop.f32.mrf.mxu0
    %546 = vmatprep.mubr.f32.mxu0 0.0
    %547 = vmatmul.mubr.f32.gmra.mxu0 %v399
    %v548 = vpop.f32.mrf.mxu0
    %v549 = vadd.f32 %v445, %v548
    %v550 = vpop.f32.mrf.mxu0
    %551 = vmatprep.mubr.f32.mxu0 0.0
    %552 = vmatmul.mubr.f32.gmra.mxu0 %v400
    %v553 = vpop.f32.mrf.mxu0
    %v554 = vadd.f32 %v445, %v553
    %v555 = vpop.f32.mrf.mxu0
    %556 = vmatprep.mubr.f32.mxu0 0.0
    %557 = vmatmul.mubr.f32.gmra.mxu0 %v401
    %v558 = vpop.f32.mrf.mxu0
    %v559 = vadd.f32 %v445, %v558
    %v560 = vpop.f32.mrf.mxu0
    %561 = vmatprep.mubr.f32.mxu0 0.0
    %562 = vmatmul.mubr.f32.gmra.mxu0 %v402
    %v563 = vpop.f32.mrf.mxu0
    %v564 = vadd.f32 %v445, %v563
    %v565 = vpop.f32.mrf.mxu0
    %566 = vmatprep.mubr.f32.mxu0 0.0
    %567 = vmatmul.mubr.f32.gmra.mxu0 %v403
    %v568 = vpop.f32.mrf.mxu0
    %v569 = vadd.f32 %v445, %v568
    %v570 = vpop.f32.mrf.mxu0
    %571 = vmatprep.mubr.f32.mxu0 0.0
    %572 = vmatmul.mubr.f32.gmra.mxu0 %v404
    %v573 = vpop.f32.mrf.mxu0
    %v574 = vadd.f32 %v445, %v573
    %v575 = vpop.f32.mrf.mxu0
    %576 = vmatprep.mubr.f32.mxu0 0.0
    %577 = vmatmul.mubr.f32.gmra.mxu0 %v405
    %v578 = vpop.f32.mrf.mxu0
    %v579 = vadd.f32 %v445, %v578
    %v580 = vpop.f32.mrf.mxu0
    %581 = vmatprep.mubr.f32.mxu0 0.0
    %582 = vmatmul.mubr.f32.gmra.mxu0 %v406
    %v583 = vpop.f32.mrf.mxu0
    %v584 = vadd.f32 %v445, %v583
    %v585 = vpop.f32.mrf.mxu0
    %586 = vmatprep.mubr.f32.mxu0 0.0
    %587 = vmatmul.mubr.f32.gmra.mxu0 %v407
    %v588 = vpop.f32.mrf.mxu0
    %v589 = vadd.f32 %v445, %v588
    %v590 = vpop.f32.mrf.mxu0
    %591 = vmatprep.mubr.f32.mxu0 0.0
    %592 = vmatmul.mubr.f32.gmra.mxu0 %v408
    %v593 = vpop.f32.mrf.mxu0
    %v594 = vadd.f32 %v445, %v593
    %v595 = vpop.f32.mrf.mxu0
    %596 = vmatprep.mubr.f32.mxu0 0.0
    %597 = vmatmul.mubr.f32.gmra.mxu0 %v409
    %v598 = vpop.f32.mrf.mxu0
    %v599 = vadd.f32 %v445, %v598
    %v600 = vpop.f32.mrf.mxu0
    %601 = vmatprep.mubr.f32.mxu0 0.0
    %602 = vmatmul.mubr.f32.gmra.mxu0 %v410
    %v603 = vpop.f32.mrf.mxu0
    %v604 = vadd.f32 %v445, %v603
    %v605 = vpop.f32.mrf.mxu0
    %606 = vmatprep.mubr.f32.mxu0 0.0
    %607 = vmatmul.mubr.f32.gmra.mxu0 %v411
    %v608 = vpop.f32.mrf.mxu0
    %v609 = vadd.f32 %v445, %v608
    %v610 = vpop.f32.mrf.mxu0
    %611 = vmatprep.mubr.f32.mxu0 0.0
    %612 = vmatmul.mubr.f32.gmra.mxu0 %v412
    %v613 = vpop.f32.mrf.mxu0
    %v614 = vadd.f32 %v445, %v613
    %v615 = vpop.f32.mrf.mxu0
    %616 = vmatprep.mubr.f32.mxu0 0.0
    %617 = vmatmul.mubr.f32.gmra.mxu0 %v413
    %v618 = vpop.f32.mrf.mxu0
    %v619 = vadd.f32 %v445, %v618
    %v620 = vpop.f32.mrf.mxu0
    %621 = vmatprep.mubr.f32.mxu0 0.0
    %622 = vmatmul.mubr.f32.gmra.mxu0 %v414
    %v623 = vpop.f32.mrf.mxu0
    %v624 = vadd.f32 %v445, %v623
    %v625 = vpop.f32.mrf.mxu0
    %626 = vmatprep.mubr.f32.mxu0 0.0
    %627 = vmatmul.mubr.f32.gmra.mxu0 %v415
    %v628 = vpop.f32.mrf.mxu0
    %v629 = vadd.f32 %v445, %v628
    %v630 = vpop.f32.mrf.mxu0
    %631 = vmatprep.mubr.f32.mxu0 0.0
    %632 = vmatmul.mubr.f32.gmra.mxu0 %v416
    %v633 = vpop.f32.mrf.mxu0
    %v634 = vadd.f32 %v445, %v633
    %v635 = vpop.f32.mrf.mxu0
    %636 = vmatprep.mubr.f32.mxu0 0.0
    %637 = vmatmul.mubr.f32.gmra.mxu0 %v417
    %v638 = vpop.f32.mrf.mxu0
    %v639 = vadd.f32 %v445, %v638
    %v640 = vpop.f32.mrf.mxu0
    %641 = vmatprep.mubr.f32.mxu0 0.0
    %642 = vmatmul.mubr.f32.gmra.mxu0 %v418
    %v643 = vpop.f32.mrf.mxu0
    %v644 = vadd.f32 %v445, %v643
    %v645 = vpop.f32.mrf.mxu0
    %646 = vmatprep.mubr.f32.mxu0 0.0
    %647 = vmatmul.mubr.f32.gmra.mxu0 %v419
    %v648 = vpop.f32.mrf.mxu0
    %v649 = vadd.f32 %v445, %v648
    %v650 = vpop.f32.mrf.mxu0
    %651 = vmatprep.mubr.f32.mxu0 0.0
    %652 = vmatmul.mubr.f32.gmra.mxu0 %v420
    %v653 = vpop.f32.mrf.mxu0
    %v654 = vadd.f32 %v445, %v653
    %v655 = vpop.f32.mrf.mxu0
    %656 = vmatprep.mubr.f32.mxu0 0.0
    %657 = vmatmul.mubr.f32.gmra.mxu0 %v421
    %v658 = vpop.f32.mrf.mxu0
    %v659 = vadd.f32 %v445, %v658
    %v660 = vpop.f32.mrf.mxu0
    %661 = vmatprep.mubr.f32.mxu0 0.0
    %662 = vmatmul.mubr.f32.gmra.mxu0 %v422
    %v663 = vpop.f32.mrf.mxu0
    %v664 = vadd.f32 %v445, %v663
    %v665 = vpop.f32.mrf.mxu0
    %666 = vmatprep.mubr.f32.mxu0 0.0
    %667 = vmatmul.mubr.f32.gmra.mxu0 %v423
    %v668 = vpop.f32.mrf.mxu0
    %v669 = vadd.f32 %v445, %v668
    %v670 = vpop.f32.mrf.mxu0
    %671 = vdwg.mxu0
    %v672 = vmax.f32 %v514, 0.0
    %v673 = vmax.f32 %v519, 0.0
    %v674 = vmax.f32 %v524, 0.0
    %v675 = vmax.f32 %v529, 0.0
    %v676 = vmax.f32 %v534, 0.0
    %v677 = vmax.f32 %v539, 0.0
    %v678 = vmax.f32 %v544, 0.0
    %v679 = vmax.f32 %v549, 0.0
    %v680 = vmax.f32 %v554, 0.0
    %v681 = vmax.f32 %v559, 0.0
    %v682 = vmax.f32 %v564, 0.0
    %v683 = vmax.f32 %v569, 0.0
    %v684 = vmax.f32 %v574, 0.0
    %v685 = vmax.f32 %v579, 0.0
    %v686 = vmax.f32 %v584, 0.0
    %v687 = vmax.f32 %v589, 0.0
    %v688 = vmax.f32 %v594, 0.0
    %v689 = vmax.f32 %v599, 0.0
    %v690 = vmax.f32 %v604, 0.0
    %v691 = vmax.f32 %v609, 0.0
    %v692 = vmax.f32 %v614, 0.0
    %v693 = vmax.f32 %v619, 0.0
    %v694 = vmax.f32 %v624, 0.0
    %v695 = vmax.f32 %v629, 0.0
    %v696 = vmax.f32 %v634, 0.0
    %v697 = vmax.f32 %v639, 0.0
    %v698 = vmax.f32 %v644, 0.0
    %v699 = vmax.f32 %v649, 0.0
    %v700 = vmax.f32 %v654, 0.0
    %v701 = vmax.f32 %v659, 0.0
    %v702 = vmax.f32 %v664, 0.0
    %v703 = vmax.f32 %v669, 0.0
    %v704 = vld [vmem:[%s5] sm:$0xff]
    %v705 = vld [vmem:[%s5 + $0x8] sm:$0xff]
    %v706 = vld [vmem:[%s5 + $0x10] sm:$0xff]
    %v707 = vld [vmem:[%s5 + $0x18] sm:$0xff]
    %v708 = vld [vmem:[%s5 + $0x20] sm:$0xff]
    %v709 = vld [vmem:[%s5 + $0x28] sm:$0xff]
    %v710 = vld [vmem:[%s5 + $0x30] sm:$0xff]
    %v711 = vld [vmem:[%s5 + $0x38] sm:$0xff]
    %v712 = vld [vmem:[%s5 + $0x40] sm:$0xff]
    %v713 = vld [vmem:[%s5 + $0x48] sm:$0xff]
    %v714 = vld [vmem:[%s5 + $0x50] sm:$0xff]
    %v715 = vld [vmem:[%s5 + $0x58] sm:$0xff]
    %v716 = vld [vmem:[%s5 + $0x60] sm:$0xff]
    %v717 = vld [vmem:[%s5 + $0x68] sm:$0xff]
    %v718 = vld [vmem:[%s5 + $0x70] sm:$0xff]
    %v719 = vld [vmem:[%s5 + $0x78] sm:$0xff]
    %v720 = vld [vmem:[%s6] sm:$0x1]
    %v722 = vlaneseq
    %v723 = vshrl.u32 %v722, 7
    %v724 = vsub.s32 0, %v723
    %v725 = vrot.slane %v720, %v724
    %727 = vmatprep.subr.mxu0 0.0
    %728 = vmatpush1.msra.mxu0 %v719
    %729 = vmatprep.subr.mxu0 0.0
    %730 = vmatpush1.msra.mxu0 %v718
    %731 = vmatprep.subr.mxu0 0.0
    %732 = vmatpush1.msra.mxu0 %v717
    %733 = vmatprep.subr.mxu0 0.0
    %734 = vmatpush1.msra.mxu0 %v716
    %735 = vmatprep.subr.mxu0 0.0
    %736 = vmatpush1.msra.mxu0 %v715
    %737 = vmatprep.subr.mxu0 0.0
    %738 = vmatpush1.msra.mxu0 %v714
    %739 = vmatprep.subr.mxu0 0.0
    %740 = vmatpush1.msra.mxu0 %v713
    %741 = vmatprep.subr.mxu0 0.0
    %742 = vmatpush1.msra.mxu0 %v712
    %743 = vmatprep.subr.mxu0 0.0
    %744 = vmatpush1.msra.mxu0 %v711
    %745 = vmatprep.subr.mxu0 0.0
    %746 = vmatpush1.msra.mxu0 %v710
    %747 = vmatprep.subr.mxu0 0.0
    %748 = vmatpush1.msra.mxu0 %v709
    %749 = vmatprep.subr.mxu0 0.0
    %750 = vmatpush1.msra.mxu0 %v708
    %751 = vmatprep.subr.mxu0 0.0
    %752 = vmatpush1.msra.mxu0 %v707
    %753 = vmatprep.subr.mxu0 0.0
    %754 = vmatpush1.msra.mxu0 %v706
    %755 = vmatprep.subr.mxu0 0.0
    %756 = vmatpush1.msra.mxu0 %v705
    %757 = vmatprep.subr.mxu0 0.0
    %758 = vmatpush1.msra.mxu0 %v704
    %759 = vmatprep.subr.mxu0 0.0
    %760 = vmatpush2.msra.mxu0 0.0
    %761 = vmatprep.subr.mxu0 0.0
    %762 = vmatpush2.msra.mxu0 0.0
    %763 = vmatprep.subr.mxu0 0.0
    %764 = vmatpush2.msra.mxu0 0.0
    %765 = vmatprep.subr.mxu0 0.0
    %766 = vmatpush2.msra.mxu0 0.0
    %767 = vmatprep.subr.mxu0 0.0
    %768 = vmatpush2.msra.mxu0 0.0
    %769 = vmatprep.subr.mxu0 0.0
    %770 = vmatpush2.msra.mxu0 0.0
    %771 = vmatprep.subr.mxu0 0.0
    %772 = vmatpush2.msra.mxu0 0.0
    %773 = vmatprep.subr.mxu0 0.0
    %774 = vmatpush2.msra.mxu0 0.0
    %775 = vmatprep.subr.mxu0 0.0
    %776 = vmatpush2.msra.mxu0 0.0
    %777 = vmatprep.subr.mxu0 0.0
    %778 = vmatpush2.msra.mxu0 0.0
    %779 = vmatprep.subr.mxu0 0.0
    %780 = vmatpush2.msra.mxu0 0.0
    %781 = vmatprep.subr.mxu0 0.0
    %782 = vmatpush2.msra.mxu0 0.0
    %783 = vmatprep.subr.mxu0 0.0
    %784 = vmatpush2.msra.mxu0 0.0
    %785 = vmatprep.subr.mxu0 0.0
    %786 = vmatpush2.msra.mxu0 0.0
    %787 = vmatprep.subr.mxu0 0.0
    %788 = vmatpush2.msra.mxu0 0.0
    %789 = vmatprep.subr.mxu0 0.0
    %790 = vmatpush2.msra.mxu0 0.0
    %791 = vmatprep.mubr.f32.mxu0 0.0
    %792 = vmatmul.mubr.f32.gmra.mxu0 %v672
    %v793 = vpop.f32.mrf.mxu0
    %v794 = vadd.f32 %v725, %v793
    %v795 = vpop.f32.mrf.mxu0
    %796 = vmatprep.mubr.f32.mxu0 0.0
    %797 = vmatmul.mubr.f32.gmra.mxu0 %v673
    %v798 = vpop.f32.mrf.mxu0
    %v799 = vadd.f32 %v725, %v798
    %v800 = vpop.f32.mrf.mxu0
    %801 = vmatprep.mubr.f32.mxu0 0.0
    %802 = vmatmul.mubr.f32.gmra.mxu0 %v674
    %v803 = vpop.f32.mrf.mxu0
    %v804 = vadd.f32 %v725, %v803
    %v805 = vpop.f32.mrf.mxu0
    %806 = vmatprep.mubr.f32.mxu0 0.0
    %807 = vmatmul.mubr.f32.gmra.mxu0 %v675
    %v808 = vpop.f32.mrf.mxu0
    %v809 = vadd.f32 %v725, %v808
    %v810 = vpop.f32.mrf.mxu0
    %811 = vmatprep.mubr.f32.mxu0 0.0
    %812 = vmatmul.mubr.f32.gmra.mxu0 %v676
    %v813 = vpop.f32.mrf.mxu0
    %v814 = vadd.f32 %v725, %v813
    %v815 = vpop.f32.mrf.mxu0
    %816 = vmatprep.mubr.f32.mxu0 0.0
    %817 = vmatmul.mubr.f32.gmra.mxu0 %v677
    %v818 = vpop.f32.mrf.mxu0
    %v819 = vadd.f32 %v725, %v818
    %v820 = vpop.f32.mrf.mxu0
    %821 = vmatprep.mubr.f32.mxu0 0.0
    %822 = vmatmul.mubr.f32.gmra.mxu0 %v678
    %v823 = vpop.f32.mrf.mxu0
    %v824 = vadd.f32 %v725, %v823
    %v825 = vpop.f32.mrf.mxu0
    %826 = vmatprep.mubr.f32.mxu0 0.0
    %827 = vmatmul.mubr.f32.gmra.mxu0 %v679
    %v828 = vpop.f32.mrf.mxu0
    %v829 = vadd.f32 %v725, %v828
    %v830 = vpop.f32.mrf.mxu0
    %831 = vmatprep.mubr.f32.mxu0 0.0
    %832 = vmatmul.mubr.f32.gmra.mxu0 %v680
    %v833 = vpop.f32.mrf.mxu0
    %v834 = vadd.f32 %v725, %v833
    %v835 = vpop.f32.mrf.mxu0
    %836 = vmatprep.mubr.f32.mxu0 0.0
    %837 = vmatmul.mubr.f32.gmra.mxu0 %v681
    %v838 = vpop.f32.mrf.mxu0
    %v839 = vadd.f32 %v725, %v838
    %v840 = vpop.f32.mrf.mxu0
    %841 = vmatprep.mubr.f32.mxu0 0.0
    %842 = vmatmul.mubr.f32.gmra.mxu0 %v682
    %v843 = vpop.f32.mrf.mxu0
    %v844 = vadd.f32 %v725, %v843
    %v845 = vpop.f32.mrf.mxu0
    %846 = vmatprep.mubr.f32.mxu0 0.0
    %847 = vmatmul.mubr.f32.gmra.mxu0 %v683
    %v848 = vpop.f32.mrf.mxu0
    %v849 = vadd.f32 %v725, %v848
    %v850 = vpop.f32.mrf.mxu0
    %851 = vmatprep.mubr.f32.mxu0 0.0
    %852 = vmatmul.mubr.f32.gmra.mxu0 %v684
    %v853 = vpop.f32.mrf.mxu0
    %v854 = vadd.f32 %v725, %v853
    %v855 = vpop.f32.mrf.mxu0
    %856 = vmatprep.mubr.f32.mxu0 0.0
    %857 = vmatmul.mubr.f32.gmra.mxu0 %v685
    %v858 = vpop.f32.mrf.mxu0
    %v859 = vadd.f32 %v725, %v858
    %v860 = vpop.f32.mrf.mxu0
    %861 = vmatprep.mubr.f32.mxu0 0.0
    %862 = vmatmul.mubr.f32.gmra.mxu0 %v686
    %v863 = vpop.f32.mrf.mxu0
    %v864 = vadd.f32 %v725, %v863
    %v865 = vpop.f32.mrf.mxu0
    %866 = vmatprep.mubr.f32.mxu0 0.0
    %867 = vmatmul.mubr.f32.gmra.mxu0 %v687
    %v868 = vpop.f32.mrf.mxu0
    %v869 = vadd.f32 %v725, %v868
    %v870 = vpop.f32.mrf.mxu0
    %871 = vmatprep.mubr.f32.mxu0 0.0
    %872 = vmatmul.mubr.f32.gmra.mxu0 %v688
    %v873 = vpop.f32.mrf.mxu0
    %v874 = vadd.f32 %v725, %v873
    %v875 = vpop.f32.mrf.mxu0
    %876 = vmatprep.mubr.f32.mxu0 0.0
    %877 = vmatmul.mubr.f32.gmra.mxu0 %v689
    %v878 = vpop.f32.mrf.mxu0
    %v879 = vadd.f32 %v725, %v878
    %v880 = vpop.f32.mrf.mxu0
    %881 = vmatprep.mubr.f32.mxu0 0.0
    %882 = vmatmul.mubr.f32.gmra.mxu0 %v690
    %v883 = vpop.f32.mrf.mxu0
    %v884 = vadd.f32 %v725, %v883
    %v885 = vpop.f32.mrf.mxu0
    %886 = vmatprep.mubr.f32.mxu0 0.0
    %887 = vmatmul.mubr.f32.gmra.mxu0 %v691
    %v888 = vpop.f32.mrf.mxu0
    %v889 = vadd.f32 %v725, %v888
    %v890 = vpop.f32.mrf.mxu0
    %891 = vmatprep.mubr.f32.mxu0 0.0
    %892 = vmatmul.mubr.f32.gmra.mxu0 %v692
    %v893 = vpop.f32.mrf.mxu0
    %v894 = vadd.f32 %v725, %v893
    %v895 = vpop.f32.mrf.mxu0
    %896 = vmatprep.mubr.f32.mxu0 0.0
    %897 = vmatmul.mubr.f32.gmra.mxu0 %v693
    %v898 = vpop.f32.mrf.mxu0
    %v899 = vadd.f32 %v725, %v898
    %v900 = vpop.f32.mrf.mxu0
    %901 = vmatprep.mubr.f32.mxu0 0.0
    %902 = vmatmul.mubr.f32.gmra.mxu0 %v694
    %v903 = vpop.f32.mrf.mxu0
    %v904 = vadd.f32 %v725, %v903
    %v905 = vpop.f32.mrf.mxu0
    %906 = vmatprep.mubr.f32.mxu0 0.0
    %907 = vmatmul.mubr.f32.gmra.mxu0 %v695
    %v908 = vpop.f32.mrf.mxu0
    %v909 = vadd.f32 %v725, %v908
    %v910 = vpop.f32.mrf.mxu0
    %911 = vmatprep.mubr.f32.mxu0 0.0
    %912 = vmatmul.mubr.f32.gmra.mxu0 %v696
    %v913 = vpop.f32.mrf.mxu0
    %v914 = vadd.f32 %v725, %v913
    %v915 = vpop.f32.mrf.mxu0
    %916 = vmatprep.mubr.f32.mxu0 0.0
    %917 = vmatmul.mubr.f32.gmra.mxu0 %v697
    %v918 = vpop.f32.mrf.mxu0
    %v919 = vadd.f32 %v725, %v918
    %v920 = vpop.f32.mrf.mxu0
    %921 = vmatprep.mubr.f32.mxu0 0.0
    %922 = vmatmul.mubr.f32.gmra.mxu0 %v698
    %v923 = vpop.f32.mrf.mxu0
    %v924 = vadd.f32 %v725, %v923
    %v925 = vpop.f32.mrf.mxu0
    %926 = vmatprep.mubr.f32.mxu0 0.0
    %927 = vmatmul.mubr.f32.gmra.mxu0 %v699
    %v928 = vpop.f32.mrf.mxu0
    %v929 = vadd.f32 %v725, %v928
    %v930 = vpop.f32.mrf.mxu0
    %931 = vmatprep.mubr.f32.mxu0 0.0
    %932 = vmatmul.mubr.f32.gmra.mxu0 %v700
    %v933 = vpop.f32.mrf.mxu0
    %v934 = vadd.f32 %v725, %v933
    %v935 = vpop.f32.mrf.mxu0
    %936 = vmatprep.mubr.f32.mxu0 0.0
    %937 = vmatmul.mubr.f32.gmra.mxu0 %v701
    %v938 = vpop.f32.mrf.mxu0
    %v939 = vadd.f32 %v725, %v938
    %v940 = vpop.f32.mrf.mxu0
    %941 = vmatprep.mubr.f32.mxu0 0.0
    %942 = vmatmul.mubr.f32.gmra.mxu0 %v702
    %v943 = vpop.f32.mrf.mxu0
    %v944 = vadd.f32 %v725, %v943
    %v945 = vpop.f32.mrf.mxu0
    %946 = vmatprep.mubr.f32.mxu0 0.0
    %947 = vmatmul.mubr.f32.gmra.mxu0 %v703
    %v948 = vpop.f32.mrf.mxu0
    %v949 = vadd.f32 %v725, %v948
    %v950 = vpop.f32.mrf.mxu0
    %951 = vdwg.mxu0
    %952 = vst [vmem:[#allocation2] sm:$0xff] %v794
    %953 = vst [vmem:[#allocation2 + $0x8] sm:$0xff] %v799
    %954 = vst [vmem:[#allocation2 + $0x10] sm:$0xff] %v804
    %955 = vst [vmem:[#allocation2 + $0x18] sm:$0xff] %v809
    %956 = vst [vmem:[#allocation2 + $0x20] sm:$0xff] %v814
    %957 = vst [vmem:[#allocation2 + $0x28] sm:$0xff] %v819
    %958 = vst [vmem:[#allocation2 + $0x30] sm:$0xff] %v824
    %959 = vst [vmem:[#allocation2 + $0x38] sm:$0xff] %v829
    %960 = vst [vmem:[#allocation2 + $0x40] sm:$0xff] %v834
    %961 = vst [vmem:[#allocation2 + $0x48] sm:$0xff] %v839
    %962 = vst [vmem:[#allocation2 + $0x50] sm:$0xff] %v844
    %963 = vst [vmem:[#allocation2 + $0x58] sm:$0xff] %v849
    %964 = vst [vmem:[#allocation2 + $0x60] sm:$0xff] %v854
    %965 = vst [vmem:[#allocation2 + $0x68] sm:$0xff] %v859
    %966 = vst [vmem:[#allocation2 + $0x70] sm:$0xff] %v864
    %967 = vst [vmem:[#allocation2 + $0x78] sm:$0xff] %v869
    %968 = vst [vmem:[#allocation2 + $0x80] sm:$0xff] %v874
    %969 = vst [vmem:[#allocation2 + $0x88] sm:$0xff] %v879
    %970 = vst [vmem:[#allocation2 + $0x90] sm:$0xff] %v884
    %971 = vst [vmem:[#allocation2 + $0x98] sm:$0xff] %v889
    %972 = vst [vmem:[#allocation2 + $0xa0] sm:$0xff] %v894
    %973 = vst [vmem:[#allocation2 + $0xa8] sm:$0xff] %v899
    %974 = vst [vmem:[#allocation2 + $0xb0] sm:$0xff] %v904
    %975 = vst [vmem:[#allocation2 + $0xb8] sm:$0xff] %v909
    %976 = vst [vmem:[#allocation2 + $0xc0] sm:$0xff] %v914
    %977 = vst [vmem:[#allocation2 + $0xc8] sm:$0xff] %v919
    %978 = vst [vmem:[#allocation2 + $0xd0] sm:$0xff] %v924
    %979 = vst [vmem:[#allocation2 + $0xd8] sm:$0xff] %v929
    %980 = vst [vmem:[#allocation2 + $0xe0] sm:$0xff] %v934
    %981 = vst [vmem:[#allocation2 + $0xe8] sm:$0xff] %v939
    %982 = vst [vmem:[#allocation2 + $0xf0] sm:$0xff] %v944
    %983 = vst [vmem:[#allocation2 + $0xf8] sm:$0xff] %v949
    // Predicated region
    $region30: #{tpu_custom_call.1} parent=1 // pred_check
      _
    $region31: #{tpu_custom_call.1} parent=1 // pred_check_branch
      %985 = sbr.rel (0) target = $region33
    $region32: #{tpu_custom_call.1} parent=1 // pred_region
      %s987 = ssub.s32 4096, 4096
      %988 = vsyncadd [#allocation3], %s987
      %s989 = sshll.u32 [#allocation2], 4
      %s990 = int_to_ptr.vmem [resolvable:$true] %s989
      %995 = dma.vmem_to_hbm [thread:$0]  %s990, 4096, %s7, [#allocation3], 128, 128, 8
    $region33: #{tpu_custom_call.1} parent=1 // pred_fallthru
      _
    // Predicated region
    $region34: #{tpu_custom_call.1} parent=1 // pred_check
      _
    $region35: #{tpu_custom_call.1} parent=1 // pred_check_branch
      %997 = sbr.rel (0) target = $region37
    $region36: #{tpu_custom_call.1} parent=1 // pred_region
      %998 = dma.done [#allocation3], 4096
    $region37: #{tpu_custom_call.1} parent=1 // pred_fallthru
      _
    %999 = vsyncpa [#allocation3], 1

</llo_original>
